<compile_context>
chip_gen: v7x
topology: tpu7x:2x2x1
jax: 0.10.0
libtpu: 0.0.40
codegen_flags: <defaults>
</compile_context>

<pallas_src>
import functools
import math

import jax
import jax.numpy as jnp
from jax.experimental import pallas as pl
from jax.experimental.pallas import tpu as pltpu


def _attention_kernel(x_ref, w_ref, bout_ref, *rest, num_heads, head_dim,
                      seq_len, has_bias):
    # x_ref:    (BB*N, C)           compute dtype (pre-flattened rows)
    # w_ref:    (C, 2*H*D + H*C)    compute dtype, cols = [Q(scaled) | K | V@Wout]
    # bout_ref: (1, C)              f32
    # bias_ref: (BB, N, N)          f32 additive mask bias (only if has_bias)
    # o_ref:    (BB, N*C)           lane-dense output slab
    if has_bias:
        bias_ref, o_ref = rest
    else:
        bias_ref = None
        (o_ref,) = rest

    T, C = x_ref.shape
    N = seq_len
    BB = T // N
    H, D = num_heads, head_dim
    HD = H * D

    x2 = x_ref[...]                                        # (T, C)
    # Single lane-dense MXU matmul producing Q, K and the Wout-folded V' for
    # every head at once (f32 MXU accumulation, rounded to compute dtype).
    qkv = jnp.dot(x2, w_ref[...], preferred_element_type=x2.dtype)  # (T, 2HD+HC)

    bias = bias_ref[...] if has_bias else None             # (BB, N, N) f32
    bout = bout_ref[...]                                   # (1, C) f32
    acc = jnp.zeros((BB, N, C), jnp.float32)

    # Static head loop; all ops are documented batched einsum patterns /
    # leading-dim reshapes.  The output projection has been folded into V'
    # so each head contributes (BB, N, C) directly to the accumulator.
    for h in range(H):
        q = qkv[:, h * D:(h + 1) * D].reshape(BB, N, D)
        k = qkv[:, HD + h * D:HD + (h + 1) * D].reshape(BB, N, D)
        vp = qkv[:, 2 * HD + h * C:2 * HD + (h + 1) * C].reshape(BB, N, C)

        # scores: contract on D, batched over BB (att_scale folded into Wq)
        s = jnp.einsum('bnd,bmd->bnm', q, k,
                       preferred_element_type=jnp.float32)          # (BB, N, N)
        if has_bias:
            s = s + bias

        # numerically-stable softmax in f32; divide via approx reciprocal (EUP)
        s = s - jnp.max(s, axis=-1, keepdims=True)
        p = jnp.exp(s)
        p = p * pl.reciprocal(jnp.sum(p, axis=-1, keepdims=True), approx=True)

        acc = acc + jnp.einsum('bnm,bmc->bnc', p.astype(x2.dtype), vp,
                               preferred_element_type=jnp.float32)  # (BB, N, C)

    out = acc + bout                                        # broadcast (1, C)
    o_ref[...] = out.reshape(BB, N * C).astype(o_ref.dtype)


def _mask_to_bias(mask, B, N):
    """torch-style boolean mask -> additive (B, N, N) f32 bias (no head dim)."""
    m = mask.astype(bool)
    if m.ndim == 2:                                  # (B, N) key mask
        m3 = jnp.broadcast_to(m[:, None, :], (B, N, N))
    elif m.ndim == 3 and m.shape[0] == 1:            # (1, N, N)
        m3 = jnp.broadcast_to(m, (B, N, N))
    elif m.ndim == 3:                                # (B, N, N)
        m3 = m
    else:
        raise ValueError("mask shape is not correct for attention")
    return jnp.where(m3, 0.0, -1e30).astype(jnp.float32)


def attention_forward(x, wqkv, wout, bout, *, num_heads, head_dim, mask=None,
                      compute_dtype=jnp.bfloat16, batch_block=None):
    """
    x:    (B, N, C)
    wqkv: (3*H*D, C)   torch Linear weight (bias=False), output order [q|k|v], head-major
    wout: (C, H*D)     torch Linear weight of the output projection
    bout: (C,)         output projection bias
    compute_dtype: jnp.bfloat16 (default, MXU-native on v6e/v7x) or jnp.float32.
        All accumulation and softmax math is f32 either way.
    batch_block: batch rows per grid step.  Default B (single grid step —
        recommended on v5e/v6e/v7x at LIBERO shapes; do not shard tiny B
        across v7x's two cores).
    """
    B, N, C = x.shape
    H, D = num_heads, head_dim
    HD = H * D
    att_scale = D ** (-0.5)
    cd = compute_dtype

    if batch_block is None:
        batch_block = B
    assert B % batch_block == 0
    # (8,128) tiling rule on the (batch_block, N*C) output block:
    assert batch_block == B or batch_block % 8 == 0, \
        "batch_block must equal B or be a multiple of 8"
    nb = B // batch_block

    # ---- wrapper-side (free, constant) weight folding ----------------------
    wq_t = wqkv[0 * HD:1 * HD, :].T * att_scale      # (C, HD), cols (h, d), scale folded
    wk_t = wqkv[1 * HD:2 * HD, :].T                  # (C, HD)
    wv_t = wqkv[2 * HD:3 * HD, :].T                  # (C, HD)
    wout_t = wout.T                                  # (HD, C), rows (h, d)
    # Fold output projection into V per head: (P (X Wv_h)) Wout_h == P (X (Wv_h Wout_h))
    wvp = jnp.einsum('chd,hdk->chk',
                     wv_t.reshape(C, H, D),
                     wout_t.reshape(H, D, C)).reshape(C, H * C)     # (C, H*C)
    w_comb = jnp.concatenate([wq_t, wk_t, wvp], axis=1).astype(cd)  # (C, 2HD+HC)
    K_out = 2 * HD + H * C
    bout_2d = bout.reshape(1, C).astype(jnp.float32)

    x2d = x.reshape(B * N, C).astype(cd)             # lane-dense 2D input slab

    inputs = [x2d, w_comb, bout_2d]
    in_specs = [
        pl.BlockSpec((batch_block * N, C), lambda i: (i, 0)),
        pl.BlockSpec((C, K_out), lambda i: (0, 0)),
        pl.BlockSpec((1, C), lambda i: (0, 0)),
    ]
    has_bias = mask is not None
    if has_bias:
        bias = _mask_to_bias(mask, B, N)                             # (B, N, N)
        inputs.append(bias)
        in_specs.append(pl.BlockSpec((batch_block, N, N), lambda i: (i, 0, 0)))

    kernel = functools.partial(_attention_kernel, num_heads=H, head_dim=D,
                               seq_len=N, has_bias=has_bias)

    itemsize = jnp.dtype(cd).itemsize
    flops = 2 * B * N * C * K_out + 2 * B * H * N * N * (D + C)
    bytes_accessed = (B * N * C * itemsize + C * K_out * itemsize + C * 4
                      + (B * N * N * 4 if has_bias else 0)
                      + B * N * C * jnp.dtype(x.dtype).itemsize)
    cost = pl.CostEstimate(flops=flops, transcendentals=B * H * N * N,
                           bytes_accessed=bytes_accessed)

    out2d = pl.pallas_call(
        kernel,
        out_shape=jax.ShapeDtypeStruct((B, N * C), x.dtype),
        grid_spec=pltpu.PrefetchScalarGridSpec(
            num_scalar_prefetch=0,
            grid=(nb,),
            in_specs=in_specs,
            out_specs=pl.BlockSpec((batch_block, N * C), lambda i: (i, 0)),
        ),
        compiler_params=pltpu.CompilerParams(
            dimension_semantics=("parallel",)),
        cost_estimate=cost,
    )(*inputs)
    return out2d.reshape(B, N, C)


def attention_reference(x, wqkv, wout, bout, *, num_heads, head_dim, mask=None):
    """Plain-JAX reference mirroring the PyTorch forward (dropout=0)."""
    B, N, C = x.shape
    H, D = num_heads, head_dim
    att_scale = D ** (-0.5)
    qkv = x @ wqkv.T                                            # (B, N, 3HD)
    qkv = jnp.transpose(qkv.reshape(B, N, 3, H, D), (2, 0, 3, 1, 4))
    q, k, v = qkv[0], qkv[1], qkv[2]
    attn = jnp.einsum("bhnd,bhmd->bhnm", q, k) * att_scale
    if mask is not None:
        m = mask.astype(bool)
        if m.ndim == 2:
            m4 = m[:, None, None, :]
        elif m.ndim == 3 and m.shape[0] == 1:
            m4 = m[None, :, :, :]
        else:
            m4 = m[:, None, :, :]
        attn = jnp.where(jnp.broadcast_to(m4, attn.shape), attn, -jnp.inf)
    attn = jax.nn.softmax(attn, axis=-1)
    out = jnp.einsum("bhnm,bhmd->bhnd", attn, v)                # (B, H, N, D)
    out = jnp.transpose(out, (0, 2, 1, 3)).reshape(B, N, H * D)
    return out @ wout.T + bout


if __name__ == "__main__":
    # Small, module-consistent shapes: dim=32, num_heads=4, head_output_size=16.
    B, N, C = 2, 8, 32
    num_heads, head_dim = 4, 16
    HD = num_heads * head_dim

    key = jax.random.PRNGKey(0)
    kx, kqkv, kwo, kbo = jax.random.split(key, 4)

    x = jax.random.normal(kx, (B, N, C), dtype=jnp.float32)

    # Deterministic "PyTorch-like" Linear init (uniform +- 1/sqrt(fan_in)).
    bound_qkv = 1.0 / math.sqrt(C)
    wqkv = jax.random.uniform(kqkv, (3 * HD, C), jnp.float32, -bound_qkv, bound_qkv)
    bound_out = 1.0 / math.sqrt(HD)
    wout = jax.random.uniform(kwo, (C, HD), jnp.float32, -bound_out, bound_out)
    bout = jax.random.uniform(kbo, (C,), jnp.float32, -bound_out, bound_out)

    # 1) f32, mask=None (strict parity vs reference).
    out = jax.block_until_ready(
        attention_forward(x, wqkv, wout, bout, compute_dtype=jnp.float32,
                          num_heads=num_heads, head_dim=head_dim))
    ref = attention_reference(x, wqkv, wout, bout,
                              num_heads=num_heads, head_dim=head_dim)
    assert out.shape == (B, N, C)
    assert jnp.allclose(out, ref, atol=1e-3, rtol=1e-3), "f32 mismatch vs reference"

    # 2) f32 with a 2D key-padding mask (last two keys masked out).
    mask = jnp.ones((B, N), jnp.int32).at[:, -2:].set(0)
    out_m = jax.block_until_ready(
        attention_forward(x, wqkv, wout, bout, mask=mask, compute_dtype=jnp.float32,
                          num_heads=num_heads, head_dim=head_dim))
    ref_m = attention_reference(x, wqkv, wout, bout, mask=mask,
                                num_heads=num_heads, head_dim=head_dim)
    assert jnp.allclose(out_m, ref_m, atol=1e-3, rtol=1e-3), "masked mismatch vs reference"

    # 3) Default path: bf16 MXU operands / f32 accumulation (v6e / v7x default).
    out_bf = jax.block_until_ready(
        attention_forward(x, wqkv, wout, bout,
                          num_heads=num_heads, head_dim=head_dim))
    assert jnp.allclose(out_bf, ref, atol=5e-2, rtol=5e-2), "bf16 mismatch vs reference"

    print("KERNEL_OK")
</pallas_src>

<mosaic_0001>
module attributes {stable_mosaic.version = 11 : i64} {
  func.func @_attention_kernel(%arg0: i32, %arg1: memref<16x32xf32, #tpu.memory_space<vmem>>, %arg2: memref<32x256xf32, #tpu.memory_space<vmem>>, %arg3: memref<1x32xf32, #tpu.memory_space<vmem>>, %arg4: memref<2x256xf32, #tpu.memory_space<vmem>>) attributes {dimension_semantics = [#tpu.dimension_semantics<parallel>], iteration_bounds = array<i64: 1>, scalar_prefetch = 0 : i64, scratch_operands = 0 : i64, tpu.core_type = #tpu.core_type<tc>, window_params = [{transform_indices = @transform_0, window_bounds = array<i64: 16, 32>}, {pipeline_mode = #tpu.pipeline_mode<synchronous>, transform_indices = @transform_1, window_bounds = array<i64: 32, 256>}, {pipeline_mode = #tpu.pipeline_mode<synchronous>, transform_indices = @transform_2, window_bounds = array<i64: 1, 32>}, {transform_indices = @transform_3, window_bounds = array<i64: 2, 256>}]} {
    %c0 = arith.constant 0 : index
    %c0_0 = arith.constant 0 : index
    %0 = vector.load %arg1[%c0, %c0_0] : memref<16x32xf32, #tpu.memory_space<vmem>>, vector<16x32xf32>
    %c0_1 = arith.constant 0 : index
    %c0_2 = arith.constant 0 : index
    %1 = vector.load %arg2[%c0_1, %c0_2] : memref<32x256xf32, #tpu.memory_space<vmem>>, vector<32x256xf32>
    %cst = arith.constant dense<0.000000e+00> : vector<16x256xf32>
    %2 = tpu.matmul %0, %1, %cst {dimension_numbers = #tpu.dot_dimension_numbers<[1], [0], [0], [1], [0, 0, 1, 1], [], []>} : vector<16x32xf32>, vector<32x256xf32>, vector<16x256xf32> -> vector<16x256xf32>
    %c0_3 = arith.constant 0 : index
    %c0_4 = arith.constant 0 : index
    %3 = vector.load %arg3[%c0_3, %c0_4] : memref<1x32xf32, #tpu.memory_space<vmem>>, vector<1x32xf32>
    %cst_5 = arith.constant 0.000000e+00 : f32
    %4 = vector.broadcast %cst_5 : f32 to vector<2x8x32xf32>
    %5 = vector.extract_strided_slice %2 {offsets = [0, 0], sizes = [16, 16], strides = [1, 1]} : vector<16x256xf32> to vector<16x16xf32>
    %6 = vector.shape_cast %5 : vector<16x16xf32> to vector<2x8x16xf32>
    %7 = vector.extract_strided_slice %2 {offsets = [0, 64], sizes = [16, 16], strides = [1, 1]} : vector<16x256xf32> to vector<16x16xf32>
    %8 = vector.shape_cast %7 : vector<16x16xf32> to vector<2x8x16xf32>
    %9 = vector.extract_strided_slice %2 {offsets = [0, 128], sizes = [16, 32], strides = [1, 1]} : vector<16x256xf32> to vector<16x32xf32>
    %10 = vector.shape_cast %9 : vector<16x32xf32> to vector<2x8x32xf32>
    "tpu.trace_start"() <{level = 10 : i32, message = "bnd,bmd->bnm"}> : () -> ()
    %cst_6 = arith.constant dense<0.000000e+00> : vector<2x8x8xf32>
    %11 = tpu.matmul %6, %8, %cst_6 {dimension_numbers = #tpu.dot_dimension_numbers<[2], [2], [1], [1], [0, 0, 0, 1, 1, 1], [0], [0]>} : vector<2x8x16xf32>, vector<2x8x16xf32>, vector<2x8x8xf32> -> vector<2x8x8xf32>
    "tpu.trace_stop"() : () -> ()
    %cst_7 = arith.constant dense<0xFF800000> : vector<2x8xf32>
    %12 = vector.multi_reduction <maximumf>, %11, %cst_7 [2] : vector<2x8x8xf32> to vector<2x8xf32>
    %13 = vector.shape_cast %12 : vector<2x8xf32> to vector<2x8x1xf32>
    %14 = vector.broadcast %13 : vector<2x8x1xf32> to vector<2x8x8xf32>
    %15 = arith.subf %11, %14 : vector<2x8x8xf32>
    %16 = math.exp %15 : vector<2x8x8xf32>
    %cst_8 = arith.constant dense<0.000000e+00> : vector<2x8xf32>
    %17 = vector.multi_reduction <add>, %16, %cst_8 [2] : vector<2x8x8xf32> to vector<2x8xf32>
    %18 = vector.shape_cast %17 : vector<2x8xf32> to vector<2x8x1xf32>
    %19 = tpu.reciprocal %18 {approx = true} : vector<2x8x1xf32> -> vector<2x8x1xf32>
    %20 = vector.broadcast %19 : vector<2x8x1xf32> to vector<2x8x8xf32>
    %21 = arith.mulf %16, %20 : vector<2x8x8xf32>
    "tpu.trace_start"() <{level = 10 : i32, message = "bnm,bmc->bnc"}> : () -> ()
    %cst_9 = arith.constant dense<0.000000e+00> : vector<2x8x32xf32>
    %22 = tpu.matmul %21, %10, %cst_9 {dimension_numbers = #tpu.dot_dimension_numbers<[2], [1], [1], [2], [0, 0, 0, 1, 1, 2], [0], [0]>} : vector<2x8x8xf32>, vector<2x8x32xf32>, vector<2x8x32xf32> -> vector<2x8x32xf32>
    "tpu.trace_stop"() : () -> ()
    %23 = arith.addf %4, %22 : vector<2x8x32xf32>
    %24 = vector.extract_strided_slice %2 {offsets = [0, 16], sizes = [16, 16], strides = [1, 1]} : vector<16x256xf32> to vector<16x16xf32>
    %25 = vector.shape_cast %24 : vector<16x16xf32> to vector<2x8x16xf32>
    %26 = vector.extract_strided_slice %2 {offsets = [0, 80], sizes = [16, 16], strides = [1, 1]} : vector<16x256xf32> to vector<16x16xf32>
    %27 = vector.shape_cast %26 : vector<16x16xf32> to vector<2x8x16xf32>
    %28 = vector.extract_strided_slice %2 {offsets = [0, 160], sizes = [16, 32], strides = [1, 1]} : vector<16x256xf32> to vector<16x32xf32>
    %29 = vector.shape_cast %28 : vector<16x32xf32> to vector<2x8x32xf32>
    "tpu.trace_start"() <{level = 10 : i32, message = "bnd,bmd->bnm"}> : () -> ()
    %cst_10 = arith.constant dense<0.000000e+00> : vector<2x8x8xf32>
    %30 = tpu.matmul %25, %27, %cst_10 {dimension_numbers = #tpu.dot_dimension_numbers<[2], [2], [1], [1], [0, 0, 0, 1, 1, 1], [0], [0]>} : vector<2x8x16xf32>, vector<2x8x16xf32>, vector<2x8x8xf32> -> vector<2x8x8xf32>
    "tpu.trace_stop"() : () -> ()
    %cst_11 = arith.constant dense<0xFF800000> : vector<2x8xf32>
    %31 = vector.multi_reduction <maximumf>, %30, %cst_11 [2] : vector<2x8x8xf32> to vector<2x8xf32>
    %32 = vector.shape_cast %31 : vector<2x8xf32> to vector<2x8x1xf32>
    %33 = vector.broadcast %32 : vector<2x8x1xf32> to vector<2x8x8xf32>
    %34 = arith.subf %30, %33 : vector<2x8x8xf32>
    %35 = math.exp %34 : vector<2x8x8xf32>
    %cst_12 = arith.constant dense<0.000000e+00> : vector<2x8xf32>
    %36 = vector.multi_reduction <add>, %35, %cst_12 [2] : vector<2x8x8xf32> to vector<2x8xf32>
    %37 = vector.shape_cast %36 : vector<2x8xf32> to vector<2x8x1xf32>
    %38 = tpu.reciprocal %37 {approx = true} : vector<2x8x1xf32> -> vector<2x8x1xf32>
    %39 = vector.broadcast %38 : vector<2x8x1xf32> to vector<2x8x8xf32>
    %40 = arith.mulf %35, %39 : vector<2x8x8xf32>
    "tpu.trace_start"() <{level = 10 : i32, message = "bnm,bmc->bnc"}> : () -> ()
    %cst_13 = arith.constant dense<0.000000e+00> : vector<2x8x32xf32>
    %41 = tpu.matmul %40, %29, %cst_13 {dimension_numbers = #tpu.dot_dimension_numbers<[2], [1], [1], [2], [0, 0, 0, 1, 1, 2], [0], [0]>} : vector<2x8x8xf32>, vector<2x8x32xf32>, vector<2x8x32xf32> -> vector<2x8x32xf32>
    "tpu.trace_stop"() : () -> ()
    %42 = arith.addf %23, %41 : vector<2x8x32xf32>
    %43 = vector.extract_strided_slice %2 {offsets = [0, 32], sizes = [16, 16], strides = [1, 1]} : vector<16x256xf32> to vector<16x16xf32>
    %44 = vector.shape_cast %43 : vector<16x16xf32> to vector<2x8x16xf32>
    %45 = vector.extract_strided_slice %2 {offsets = [0, 96], sizes = [16, 16], strides = [1, 1]} : vector<16x256xf32> to vector<16x16xf32>
    %46 = vector.shape_cast %45 : vector<16x16xf32> to vector<2x8x16xf32>
    %47 = vector.extract_strided_slice %2 {offsets = [0, 192], sizes = [16, 32], strides = [1, 1]} : vector<16x256xf32> to vector<16x32xf32>
    %48 = vector.shape_cast %47 : vector<16x32xf32> to vector<2x8x32xf32>
    "tpu.trace_start"() <{level = 10 : i32, message = "bnd,bmd->bnm"}> : () -> ()
    %cst_14 = arith.constant dense<0.000000e+00> : vector<2x8x8xf32>
    %49 = tpu.matmul %44, %46, %cst_14 {dimension_numbers = #tpu.dot_dimension_numbers<[2], [2], [1], [1], [0, 0, 0, 1, 1, 1], [0], [0]>} : vector<2x8x16xf32>, vector<2x8x16xf32>, vector<2x8x8xf32> -> vector<2x8x8xf32>
    "tpu.trace_stop"() : () -> ()
    %cst_15 = arith.constant dense<0xFF800000> : vector<2x8xf32>
    %50 = vector.multi_reduction <maximumf>, %49, %cst_15 [2] : vector<2x8x8xf32> to vector<2x8xf32>
    %51 = vector.shape_cast %50 : vector<2x8xf32> to vector<2x8x1xf32>
    %52 = vector.broadcast %51 : vector<2x8x1xf32> to vector<2x8x8xf32>
    %53 = arith.subf %49, %52 : vector<2x8x8xf32>
    %54 = math.exp %53 : vector<2x8x8xf32>
    %cst_16 = arith.constant dense<0.000000e+00> : vector<2x8xf32>
    %55 = vector.multi_reduction <add>, %54, %cst_16 [2] : vector<2x8x8xf32> to vector<2x8xf32>
    %56 = vector.shape_cast %55 : vector<2x8xf32> to vector<2x8x1xf32>
    %57 = tpu.reciprocal %56 {approx = true} : vector<2x8x1xf32> -> vector<2x8x1xf32>
    %58 = vector.broadcast %57 : vector<2x8x1xf32> to vector<2x8x8xf32>
    %59 = arith.mulf %54, %58 : vector<2x8x8xf32>
    "tpu.trace_start"() <{level = 10 : i32, message = "bnm,bmc->bnc"}> : () -> ()
    %cst_17 = arith.constant dense<0.000000e+00> : vector<2x8x32xf32>
    %60 = tpu.matmul %59, %48, %cst_17 {dimension_numbers = #tpu.dot_dimension_numbers<[2], [1], [1], [2], [0, 0, 0, 1, 1, 2], [0], [0]>} : vector<2x8x8xf32>, vector<2x8x32xf32>, vector<2x8x32xf32> -> vector<2x8x32xf32>
    "tpu.trace_stop"() : () -> ()
    %61 = arith.addf %42, %60 : vector<2x8x32xf32>
    %62 = vector.extract_strided_slice %2 {offsets = [0, 48], sizes = [16, 16], strides = [1, 1]} : vector<16x256xf32> to vector<16x16xf32>
    %63 = vector.shape_cast %62 : vector<16x16xf32> to vector<2x8x16xf32>
    %64 = vector.extract_strided_slice %2 {offsets = [0, 112], sizes = [16, 16], strides = [1, 1]} : vector<16x256xf32> to vector<16x16xf32>
    %65 = vector.shape_cast %64 : vector<16x16xf32> to vector<2x8x16xf32>
    %66 = vector.extract_strided_slice %2 {offsets = [0, 224], sizes = [16, 32], strides = [1, 1]} : vector<16x256xf32> to vector<16x32xf32>
    %67 = vector.shape_cast %66 : vector<16x32xf32> to vector<2x8x32xf32>
    "tpu.trace_start"() <{level = 10 : i32, message = "bnd,bmd->bnm"}> : () -> ()
    %cst_18 = arith.constant dense<0.000000e+00> : vector<2x8x8xf32>
    %68 = tpu.matmul %63, %65, %cst_18 {dimension_numbers = #tpu.dot_dimension_numbers<[2], [2], [1], [1], [0, 0, 0, 1, 1, 1], [0], [0]>} : vector<2x8x16xf32>, vector<2x8x16xf32>, vector<2x8x8xf32> -> vector<2x8x8xf32>
    "tpu.trace_stop"() : () -> ()
    %cst_19 = arith.constant dense<0xFF800000> : vector<2x8xf32>
    %69 = vector.multi_reduction <maximumf>, %68, %cst_19 [2] : vector<2x8x8xf32> to vector<2x8xf32>
    %70 = vector.shape_cast %69 : vector<2x8xf32> to vector<2x8x1xf32>
    %71 = vector.broadcast %70 : vector<2x8x1xf32> to vector<2x8x8xf32>
    %72 = arith.subf %68, %71 : vector<2x8x8xf32>
    %73 = math.exp %72 : vector<2x8x8xf32>
    %cst_20 = arith.constant dense<0.000000e+00> : vector<2x8xf32>
    %74 = vector.multi_reduction <add>, %73, %cst_20 [2] : vector<2x8x8xf32> to vector<2x8xf32>
    %75 = vector.shape_cast %74 : vector<2x8xf32> to vector<2x8x1xf32>
    %76 = tpu.reciprocal %75 {approx = true} : vector<2x8x1xf32> -> vector<2x8x1xf32>
    %77 = vector.broadcast %76 : vector<2x8x1xf32> to vector<2x8x8xf32>
    %78 = arith.mulf %73, %77 : vector<2x8x8xf32>
    "tpu.trace_start"() <{level = 10 : i32, message = "bnm,bmc->bnc"}> : () -> ()
    %cst_21 = arith.constant dense<0.000000e+00> : vector<2x8x32xf32>
    %79 = tpu.matmul %78, %67, %cst_21 {dimension_numbers = #tpu.dot_dimension_numbers<[2], [1], [1], [2], [0, 0, 0, 1, 1, 2], [0], [0]>} : vector<2x8x8xf32>, vector<2x8x32xf32>, vector<2x8x32xf32> -> vector<2x8x32xf32>
    "tpu.trace_stop"() : () -> ()
    %80 = arith.addf %61, %79 : vector<2x8x32xf32>
    %81 = vector.shape_cast %3 : vector<1x32xf32> to vector<1x1x32xf32>
    %82 = vector.broadcast %81 : vector<1x1x32xf32> to vector<2x8x32xf32>
    %83 = arith.addf %80, %82 : vector<2x8x32xf32>
    %84 = vector.shape_cast %83 : vector<2x8x32xf32> to vector<2x256xf32>
    %c0_22 = arith.constant 0 : index
    %c0_23 = arith.constant 0 : index
    %85 = vector.load %arg4[%c0_22, %c0_23] : memref<2x256xf32, #tpu.memory_space<vmem>>, vector<2x256xf32>
    tpu.vector_store %arg4[%c0_22, %c0_23], %84 {strides = array<i32>} : memref<2x256xf32, #tpu.memory_space<vmem>>, vector<2x256xf32>,
    return
  }
  func.func @transform_0(%arg0: i32) -> (i32, i32) {
    %c0_i32 = arith.constant 0 : i32
    %c0_i32_0 = arith.constant 0 : i32
    return %arg0, %c0_i32 : i32, i32
  }
  func.func @transform_1(%arg0: i32) -> (i32, i32) {
    %c0_i32 = arith.constant 0 : i32
    %c0_i32_0 = arith.constant 0 : i32
    %c0_i32_1 = arith.constant 0 : i32
    return %c0_i32, %c0_i32_0 : i32, i32
  }
  func.func @transform_2(%arg0: i32) -> (i32, i32) {
    %c0_i32 = arith.constant 0 : i32
    %c0_i32_0 = arith.constant 0 : i32
    %c0_i32_1 = arith.constant 0 : i32
    return %c0_i32, %c0_i32_0 : i32, i32
  }
  func.func @transform_3(%arg0: i32) -> (i32, i32) {
    %c0_i32 = arith.constant 0 : i32
    %c0_i32_0 = arith.constant 0 : i32
    return %arg0, %c0_i32 : i32, i32
  }
}

</mosaic_0001>

<llo_original>
// kernel: tpu_custom_call.1
$region0: #{tpu_custom_call.1}
  #allocation0 [shape = 'u32[]', space=smem, size = 0x4, offset = 0x4, fixed_abs, tag = 'smem constant byte address 0x4 - core index']
  #allocation1 [shape = 'u32[144,128]{1,0:T(1,128)}', space=vmem, size = 0x12000, scoped, tag = 'internal scratch']
  %s0 = inlined_call_operand.hbm [shape: f32[16,32], index: 0, kind: input, shape index: {}]
  %s1 = inlined_call_operand.hbm [shape: f32[32,256], index: 1, kind: input, shape index: {}]
  %s2 = inlined_call_operand.vmem [shape: f32[1,32], index: 2, kind: input, shape index: {}]
  %s3 = inlined_call_operand.hbm [shape: f32[2,256], index: 3, kind: output, shape index: {}]
  %s4 = sld [smem:[#allocation0]]
  $region30: #{tpu_custom_call.1} parent=0
    _
  %s6 = ssub.s32 1, %s4
  %s7 = scalar_select 0, %s6, %s4
  $region1: #{tpu_custom_call.1} parent=0
    #allocation2 [shape = 'u8[8192]{0}', space=vmem, size = 0x2000, scoped, tag = 'input window, operand 0, single buffered']
    #allocation3 [shape = 's32[1]{0}', space=sflag, size = 0x4, scoped, tag = 'scoped memory for tpu_custom_call.1']
    #allocation4 [shape = 's32[1]{0}', space=sflag, size = 0x4, scoped, tag = 'scoped memory for tpu_custom_call.1']
    #allocation5 [shape = 'u8[32768]{0}', space=vmem, size = 0x8000, scoped, tag = 'input window, operand 1, single buffered']
    #allocation6 [shape = 's32[1]{0}', space=sflag, size = 0x4, scoped, tag = 'scoped memory for tpu_custom_call.1']
    #allocation7 [shape = 'u8[2048]{0}', space=vmem, size = 0x800, scoped, tag = 'output window, operand 0, single buffered']
    %8 = vsyncpa [#allocation3], 0
    %9 = vsyncpa [#allocation6], 0
    %10 = vsyncpa [#allocation4], 0
    // Predicated region
    $region2: #{tpu_custom_call.1} parent=1 // pred_check
      _
    $region3: #{tpu_custom_call.1} parent=1 // pred_check_branch
      %12 = sbr.rel (0) target = $region5
    $region4: #{tpu_custom_call.1} parent=1 // pred_region
      %s14 = ssub.s32 256, 256
      %15 = vsyncadd [#allocation3], %s14
      %s16 = sshll.u32 [#allocation2], 4
      %s17 = int_to_ptr.vmem [resolvable:$true] %s16
      %22 = dma.hbm_to_vmem [thread:$0]  %s0, 256, %s17, [#allocation3], 128, 128, 8
    $region5: #{tpu_custom_call.1} parent=1 // pred_fallthru
      _
    // Predicated region
    $region6: #{tpu_custom_call.1} parent=1 // pred_check
      _
    $region7: #{tpu_custom_call.1} parent=1 // pred_check_branch
      %24 = sbr.rel (0) target = $region9
    $region8: #{tpu_custom_call.1} parent=1 // pred_region
      %s26 = ssub.s32 1024, 1024
      %27 = vsyncadd [#allocation6], %s26
      %s28 = sshll.u32 [#allocation5], 4
      %s29 = int_to_ptr.vmem [resolvable:$true] %s28
      %34 = dma.hbm_to_vmem [thread:$0]  %s1, 1024, %s29, [#allocation6], 256, 256, 16
    $region9: #{tpu_custom_call.1} parent=1 // pred_fallthru
      _
    // Predicated region
    $region10: #{tpu_custom_call.1} parent=1 // pred_check
      _
    $region11: #{tpu_custom_call.1} parent=1 // pred_check_branch
      %36 = sbr.rel (0) target = $region13
    $region12: #{tpu_custom_call.1} parent=1 // pred_region
      _
    $region13: #{tpu_custom_call.1} parent=1 // pred_fallthru
      _
    // Predicated region
    $region14: #{tpu_custom_call.1} parent=1 // pred_check
      _
    $region15: #{tpu_custom_call.1} parent=1 // pred_check_branch
      %38 = sbr.rel (0) target = $region17
    $region16: #{tpu_custom_call.1} parent=1 // pred_region
      %39 = dma.done [#allocation3], 256
    $region17: #{tpu_custom_call.1} parent=1 // pred_fallthru
      _
    // Predicated region
    $region18: #{tpu_custom_call.1} parent=1 // pred_check
      _
    $region19: #{tpu_custom_call.1} parent=1 // pred_check_branch
      %41 = sbr.rel (0) target = $region21
    $region20: #{tpu_custom_call.1} parent=1 // pred_region
      %42 = dma.done [#allocation6], 1024
    $region21: #{tpu_custom_call.1} parent=1 // pred_fallthru
      _
    %v43 = vld [vmem:[#allocation2] sm:$0xff]
    %v44 = vld [vmem:[#allocation2 + $0x8] sm:$0xff]
    %v45 = vld [vmem:[#allocation5] sm:$0xff]
    %v46 = vld [vmem:[#allocation5 + $0x8] sm:$0xff]
    %v47 = vld [vmem:[#allocation5 + $0x10] sm:$0xff]
    %v48 = vld [vmem:[#allocation5 + $0x18] sm:$0xff]
    %v49 = vld [vmem:[#allocation5 + $0x20] sm:$0xff]
    %v50 = vld [vmem:[#allocation5 + $0x28] sm:$0xff]
    %v51 = vld [vmem:[#allocation5 + $0x30] sm:$0xff]
    %v52 = vld [vmem:[#allocation5 + $0x38] sm:$0xff]
    %vm53 = vcmask 261120
    %v55 = vsel %vm53, %v43, 0
    %v58 = vsel %vm53, %v44, 0
    %60 = vmatprep.subr.mxu0 %v46
    %61 = vmatpush1.msra.mxu0 %v45
    %62 = vmatprep.subr.mxu0 %v48
    %63 = vmatpush1.msra.mxu0 %v47
    %64 = vmatprep.subr.mxu0 %v50
    %65 = vmatpush1.msra.mxu0 %v49
    %66 = vmatprep.subr.mxu0 %v52
    %67 = vmatpush1.msra.mxu0 %v51
    %68 = vmatprep.subr.mxu0 0.0
    %69 = vmatpush1.msra.mxu0 0.0
    %70 = vmatprep.subr.mxu0 0.0
    %71 = vmatpush1.msra.mxu0 0.0
    %72 = vmatprep.subr.mxu0 0.0
    %73 = vmatpush1.msra.mxu0 0.0
    %74 = vmatprep.subr.mxu0 0.0
    %75 = vmatpush1.msra.mxu0 0.0
    %76 = vmatprep.subr.mxu0 0.0
    %77 = vmatpush1.msra.mxu0 0.0
    %78 = vmatprep.subr.mxu0 0.0
    %79 = vmatpush1.msra.mxu0 0.0
    %80 = vmatprep.subr.mxu0 0.0
    %81 = vmatpush1.msra.mxu0 0.0
    %82 = vmatprep.subr.mxu0 0.0
    %83 = vmatpush1.msra.mxu0 0.0
    %84 = vmatprep.subr.mxu0 0.0
    %85 = vmatpush1.msra.mxu0 0.0
    %86 = vmatprep.subr.mxu0 0.0
    %87 = vmatpush1.msra.mxu0 0.0
    %88 = vmatprep.subr.mxu0 0.0
    %89 = vmatpush1.msra.mxu0 0.0
    %90 = vmatprep.subr.mxu0 0.0
    %91 = vmatpush1.msra.mxu0 0.0
    %92 = vmatprep.subr.mxu0 0.0
    %93 = vmatpush1.msra.mxu0 0.0
    %94 = vmatprep.subr.mxu0 0.0
    %95 = vmatpush1.msra.mxu0 0.0
    %96 = vmatprep.subr.mxu0 0.0
    %97 = vmatpush1.msra.mxu0 0.0
    %98 = vmatprep.subr.mxu0 0.0
    %99 = vmatpush1.msra.mxu0 0.0
    %100 = vmatprep.subr.mxu0 0.0
    %101 = vmatpush1.msra.mxu0 0.0
    %102 = vmatprep.subr.mxu0 0.0
    %103 = vmatpush1.msra.mxu0 0.0
    %104 = vmatprep.subr.mxu0 0.0
    %105 = vmatpush1.msra.mxu0 0.0
    %106 = vmatprep.subr.mxu0 0.0
    %107 = vmatpush1.msra.mxu0 0.0
    %108 = vmatprep.subr.mxu0 0.0
    %109 = vmatpush1.msra.mxu0 0.0
    %110 = vmatprep.subr.mxu0 0.0
    %111 = vmatpush1.msra.mxu0 0.0
    %112 = vmatprep.subr.mxu0 0.0
    %113 = vmatpush1.msra.mxu0 0.0
    %114 = vmatprep.subr.mxu0 0.0
    %115 = vmatpush1.msra.mxu0 0.0
    %116 = vmatprep.subr.mxu0 0.0
    %117 = vmatpush1.msra.mxu0 0.0
    %118 = vmatprep.subr.mxu0 0.0
    %119 = vmatpush1.msra.mxu0 0.0
    %120 = vmatprep.subr.mxu0 0.0
    %121 = vmatpush1.msra.mxu0 0.0
    %122 = vmatprep.subr.mxu0 0.0
    %123 = vmatpush1.msra.mxu0 0.0
    %124 = vmatprep.mubr.f32.mxu0 0.0
    %125 = vmatmul.mubr.f32.gmra.mrb[0].mxu0 %v55
    %v126 = vpop.f32.mrb[0].mxu0
    %v127 = vadd.f32 0.0, %v126
    %v128 = vpop.f32.mrb[0].mxu0
    %v129 = vadd.f32 0.0, %v128
    %130 = vmatprep.mubr.f32.mxu0 0.0
    %131 = vmatmul.mubr.f32.gmra.mrb[0].mxu0 %v58
    %v132 = vpop.f32.mrb[0].mxu0
    %v133 = vadd.f32 0.0, %v132
    %v134 = vpop.f32.mrb[0].mxu0
    %v135 = vadd.f32 0.0, %v134
    %136 = vdwg.mxu0
    %v137 = vld [vmem:[%s2] sm:$0x1]
    %139 = vrot.lane.b32.xlu0 %v127, 64
    %v140 = vpop.permute.xlu0 %139
    %vm141 = vcmask 130048
    %v142 = vsel %vm141, %v127, 0
    %v144 = vsel %vm141, %v140, 0
    %146 = vmatprep.subr.mxu0 0.0
    %147 = vmatpush1.xpose.msra.mxu0 %v144
    %148 = vmatprep.subr.mxu0 0.0
    %149 = vmatpush1.xpose.msra.mxu0 0.0
    %150 = vmatprep.subr.mxu0 0.0
    %151 = vmatpush1.xpose.msra.mxu0 0.0
    %152 = vmatprep.subr.mxu0 0.0
    %153 = vmatpush1.xpose.msra.mxu0 0.0
    %154 = vmatprep.subr.mxu0 0.0
    %155 = vmatpush1.xpose.msra.mxu0 0.0
    %156 = vmatprep.subr.mxu0 0.0
    %157 = vmatpush1.xpose.msra.mxu0 0.0
    %158 = vmatprep.subr.mxu0 0.0
    %159 = vmatpush1.xpose.msra.mxu0 0.0
    %160 = vmatprep.subr.mxu0 0.0
    %161 = vmatpush1.xpose.msra.mxu0 0.0
    %162 = vmatprep.subr.mxu0 0.0
    %163 = vmatpush1.xpose.msra.mxu0 0.0
    %164 = vmatprep.subr.mxu0 0.0
    %165 = vmatpush1.xpose.msra.mxu0 0.0
    %166 = vmatprep.subr.mxu0 0.0
    %167 = vmatpush1.xpose.msra.mxu0 0.0
    %168 = vmatprep.subr.mxu0 0.0
    %169 = vmatpush1.xpose.msra.mxu0 0.0
    %170 = vmatprep.subr.mxu0 0.0
    %171 = vmatpush1.xpose.msra.mxu0 0.0
    %172 = vmatprep.subr.mxu0 0.0
    %173 = vmatpush1.xpose.msra.mxu0 0.0
    %174 = vmatprep.subr.mxu0 0.0
    %175 = vmatpush1.xpose.msra.mxu0 0.0
    %176 = vmatprep.subr.mxu0 0.0
    %177 = vmatpush1.xpose.msra.mxu0 0.0
    %178 = vmatprep.subr.mxu0 0.0
    %179 = vmatpush1.xpose.msra.mxu0 0.0
    %180 = vmatprep.subr.mxu0 0.0
    %181 = vmatpush1.xpose.msra.mxu0 0.0
    %182 = vmatprep.subr.mxu0 0.0
    %183 = vmatpush1.xpose.msra.mxu0 0.0
    %184 = vmatprep.subr.mxu0 0.0
    %185 = vmatpush1.xpose.msra.mxu0 0.0
    %186 = vmatprep.subr.mxu0 0.0
    %187 = vmatpush1.xpose.msra.mxu0 0.0
    %188 = vmatprep.subr.mxu0 0.0
    %189 = vmatpush1.xpose.msra.mxu0 0.0
    %190 = vmatprep.subr.mxu0 0.0
    %191 = vmatpush1.xpose.msra.mxu0 0.0
    %192 = vmatprep.subr.mxu0 0.0
    %193 = vmatpush1.xpose.msra.mxu0 0.0
    %194 = vmatprep.subr.mxu0 0.0
    %195 = vmatpush1.xpose.msra.mxu0 0.0
    %196 = vmatprep.subr.mxu0 0.0
    %197 = vmatpush1.xpose.msra.mxu0 0.0
    %198 = vmatprep.subr.mxu0 0.0
    %199 = vmatpush1.xpose.msra.mxu0 0.0
    %200 = vmatprep.subr.mxu0 0.0
    %201 = vmatpush1.xpose.msra.mxu0 0.0
    %202 = vmatprep.subr.mxu0 0.0
    %203 = vmatpush1.xpose.msra.mxu0 0.0
    %204 = vmatprep.subr.mxu0 0.0
    %205 = vmatpush1.xpose.msra.mxu0 0.0
    %206 = vmatprep.subr.mxu0 0.0
    %207 = vmatpush1.xpose.msra.mxu0 0.0
    %208 = vmatprep.subr.mxu0 0.0
    %209 = vmatpush1.xpose.msra.mxu0 0.0
    %210 = vmatprep.mubr.f32.mxu0 0.0
    %211 = vmatmul.mubr.f32.gmra.mrb[0].mxu0 %v142
    %v212 = vpop.f32.mrb[0].mxu0
    %v213 = vadd.f32 0.0, %v212
    %v214 = vpop.f32.mrb[0].mxu0
    %215 = vdwg.mxu0
    %217 = vrot.lane.b32.xlu0 %v133, 64
    %v218 = vpop.permute.xlu0 %217
    %v219 = vsel %vm141, %v133, 0
    %v221 = vsel %vm141, %v218, 0
    %223 = vmatprep.subr.mxu0 0.0
    %224 = vmatpush1.xpose.msra.mxu0 %v221
    %225 = vmatprep.subr.mxu0 0.0
    %226 = vmatpush1.xpose.msra.mxu0 0.0
    %227 = vmatprep.subr.mxu0 0.0
    %228 = vmatpush1.xpose.msra.mxu0 0.0
    %229 = vmatprep.subr.mxu0 0.0
    %230 = vmatpush1.xpose.msra.mxu0 0.0
    %231 = vmatprep.subr.mxu0 0.0
    %232 = vmatpush1.xpose.msra.mxu0 0.0
    %233 = vmatprep.subr.mxu0 0.0
    %234 = vmatpush1.xpose.msra.mxu0 0.0
    %235 = vmatprep.subr.mxu0 0.0
    %236 = vmatpush1.xpose.msra.mxu0 0.0
    %237 = vmatprep.subr.mxu0 0.0
    %238 = vmatpush1.xpose.msra.mxu0 0.0
    %239 = vmatprep.subr.mxu0 0.0
    %240 = vmatpush1.xpose.msra.mxu0 0.0
    %241 = vmatprep.subr.mxu0 0.0
    %242 = vmatpush1.xpose.msra.mxu0 0.0
    %243 = vmatprep.subr.mxu0 0.0
    %244 = vmatpush1.xpose.msra.mxu0 0.0
    %245 = vmatprep.subr.mxu0 0.0
    %246 = vmatpush1.xpose.msra.mxu0 0.0
    %247 = vmatprep.subr.mxu0 0.0
    %248 = vmatpush1.xpose.msra.mxu0 0.0
    %249 = vmatprep.subr.mxu0 0.0
    %250 = vmatpush1.xpose.msra.mxu0 0.0
    %251 = vmatprep.subr.mxu0 0.0
    %252 = vmatpush1.xpose.msra.mxu0 0.0
    %253 = vmatprep.subr.mxu0 0.0
    %254 = vmatpush1.xpose.msra.mxu0 0.0
    %255 = vmatprep.subr.mxu0 0.0
    %256 = vmatpush1.xpose.msra.mxu0 0.0
    %257 = vmatprep.subr.mxu0 0.0
    %258 = vmatpush1.xpose.msra.mxu0 0.0
    %259 = vmatprep.subr.mxu0 0.0
    %260 = vmatpush1.xpose.msra.mxu0 0.0
    %261 = vmatprep.subr.mxu0 0.0
    %262 = vmatpush1.xpose.msra.mxu0 0.0
    %263 = vmatprep.subr.mxu0 0.0
    %264 = vmatpush1.xpose.msra.mxu0 0.0
    %265 = vmatprep.subr.mxu0 0.0
    %266 = vmatpush1.xpose.msra.mxu0 0.0
    %267 = vmatprep.subr.mxu0 0.0
    %268 = vmatpush1.xpose.msra.mxu0 0.0
    %269 = vmatprep.subr.mxu0 0.0
    %270 = vmatpush1.xpose.msra.mxu0 0.0
    %271 = vmatprep.subr.mxu0 0.0
    %272 = vmatpush1.xpose.msra.mxu0 0.0
    %273 = vmatprep.subr.mxu0 0.0
    %274 = vmatpush1.xpose.msra.mxu0 0.0
    %275 = vmatprep.subr.mxu0 0.0
    %276 = vmatpush1.xpose.msra.mxu0 0.0
    %277 = vmatprep.subr.mxu0 0.0
    %278 = vmatpush1.xpose.msra.mxu0 0.0
    %279 = vmatprep.subr.mxu0 0.0
    %280 = vmatpush1.xpose.msra.mxu0 0.0
    %281 = vmatprep.subr.mxu0 0.0
    %282 = vmatpush1.xpose.msra.mxu0 0.0
    %283 = vmatprep.subr.mxu0 0.0
    %284 = vmatpush1.xpose.msra.mxu0 0.0
    %285 = vmatprep.subr.mxu0 0.0
    %286 = vmatpush1.xpose.msra.mxu0 0.0
    %287 = vmatprep.mubr.f32.mxu0 0.0
    %288 = vmatmul.mubr.f32.gmra.mrb[0].mxu0 %v219
    %v289 = vpop.f32.mrb[0].mxu0
    %v290 = vadd.f32 0.0, %v289
    %v291 = vpop.f32.mrb[0].mxu0
    %292 = vdwg.mxu0
    %vm293 = vcmask 64512
    %v294 = vsel %vm293, %v213, -inf
    %295 = vmax.xlane.f32.xlu0 %v294
    %v296 = vpop.xlane.xlu0 %295
    %v297 = vsel %vm293, %v290, -inf
    %298 = vmax.xlane.f32.xlu0 %v297
    %v299 = vpop.xlane.xlu0 %298
    %v300 = vsub.f32 %v213, %v296
    %v301 = vsub.f32 %v290, %v299
    %v302 = vmul.f32 %v300, 1.442695
    %v303 = vpow.pop %v302
    %v304 = vmul.f32 %v301, 1.442695
    %v305 = vpow.pop %v304
    %v306 = vsel %vm293, %v303, 0.0
    %307 = vadd.xlane.f32.xlu0 %v306
    %v308 = vpop.xlane.xlu0 %307
    %v309 = vsel %vm293, %v305, 0.0
    %310 = vadd.xlane.f32.xlu0 %v309
    %v311 = vpop.xlane.xlu0 %310
    %v312 = vrcp.pop %v308
    %v313 = vrcp.pop %v311
    %v314 = vmul.f32 %v303, %v312
    %v315 = vmul.f32 %v305, %v313
    %316 = vrot.lane.b32.xlu0 %v127, 112
    %v317 = vpop.permute.xlu0 %316
    %318 = vrot.lane.b32.xlu0 %v127, 48
    %v319 = vpop.permute.xlu0 %318
    %v320 = vsel %vm141, %v317, 0
    %v322 = vsel %vm141, %v319, 0
    %324 = vmatprep.subr.mxu0 0.0
    %325 = vmatpush1.xpose.msra.mxu0 %v322
    %326 = vmatprep.subr.mxu0 0.0
    %327 = vmatpush1.xpose.msra.mxu0 0.0
    %328 = vmatprep.subr.mxu0 0.0
    %329 = vmatpush1.xpose.msra.mxu0 0.0
    %330 = vmatprep.subr.mxu0 0.0
    %331 = vmatpush1.xpose.msra.mxu0 0.0
    %332 = vmatprep.subr.mxu0 0.0
    %333 = vmatpush1.xpose.msra.mxu0 0.0
    %334 = vmatprep.subr.mxu0 0.0
    %335 = vmatpush1.xpose.msra.mxu0 0.0
    %336 = vmatprep.subr.mxu0 0.0
    %337 = vmatpush1.xpose.msra.mxu0 0.0
    %338 = vmatprep.subr.mxu0 0.0
    %339 = vmatpush1.xpose.msra.mxu0 0.0
    %340 = vmatprep.subr.mxu0 0.0
    %341 = vmatpush1.xpose.msra.mxu0 0.0
    %342 = vmatprep.subr.mxu0 0.0
    %343 = vmatpush1.xpose.msra.mxu0 0.0
    %344 = vmatprep.subr.mxu0 0.0
    %345 = vmatpush1.xpose.msra.mxu0 0.0
    %346 = vmatprep.subr.mxu0 0.0
    %347 = vmatpush1.xpose.msra.mxu0 0.0
    %348 = vmatprep.subr.mxu0 0.0
    %349 = vmatpush1.xpose.msra.mxu0 0.0
    %350 = vmatprep.subr.mxu0 0.0
    %351 = vmatpush1.xpose.msra.mxu0 0.0
    %352 = vmatprep.subr.mxu0 0.0
    %353 = vmatpush1.xpose.msra.mxu0 0.0
    %354 = vmatprep.subr.mxu0 0.0
    %355 = vmatpush1.xpose.msra.mxu0 0.0
    %356 = vmatprep.subr.mxu0 0.0
    %357 = vmatpush1.xpose.msra.mxu0 0.0
    %358 = vmatprep.subr.mxu0 0.0
    %359 = vmatpush1.xpose.msra.mxu0 0.0
    %360 = vmatprep.subr.mxu0 0.0
    %361 = vmatpush1.xpose.msra.mxu0 0.0
    %362 = vmatprep.subr.mxu0 0.0
    %363 = vmatpush1.xpose.msra.mxu0 0.0
    %364 = vmatprep.subr.mxu0 0.0
    %365 = vmatpush1.xpose.msra.mxu0 0.0
    %366 = vmatprep.subr.mxu0 0.0
    %367 = vmatpush1.xpose.msra.mxu0 0.0
    %368 = vmatprep.subr.mxu0 0.0
    %369 = vmatpush1.xpose.msra.mxu0 0.0
    %370 = vmatprep.subr.mxu0 0.0
    %371 = vmatpush1.xpose.msra.mxu0 0.0
    %372 = vmatprep.subr.mxu0 0.0
    %373 = vmatpush1.xpose.msra.mxu0 0.0
    %374 = vmatprep.subr.mxu0 0.0
    %375 = vmatpush1.xpose.msra.mxu0 0.0
    %376 = vmatprep.subr.mxu0 0.0
    %377 = vmatpush1.xpose.msra.mxu0 0.0
    %378 = vmatprep.subr.mxu0 0.0
    %379 = vmatpush1.xpose.msra.mxu0 0.0
    %380 = vmatprep.subr.mxu0 0.0
    %381 = vmatpush1.xpose.msra.mxu0 0.0
    %382 = vmatprep.subr.mxu0 0.0
    %383 = vmatpush1.xpose.msra.mxu0 0.0
    %384 = vmatprep.subr.mxu0 0.0
    %385 = vmatpush1.xpose.msra.mxu0 0.0
    %386 = vmatprep.subr.mxu0 0.0
    %387 = vmatpush1.xpose.msra.mxu0 0.0
    %388 = vmatprep.mubr.f32.mxu0 0.0
    %389 = vmatmul.mubr.f32.gmra.mrb[0].mxu0 %v320
    %v390 = vpop.f32.mrb[0].mxu0
    %v391 = vadd.f32 0.0, %v390
    %v392 = vpop.f32.mrb[0].mxu0
    %393 = vdwg.mxu0
    %394 = vrot.lane.b32.xlu0 %v133, 112
    %v395 = vpop.permute.xlu0 %394
    %396 = vrot.lane.b32.xlu0 %v133, 48
    %v397 = vpop.permute.xlu0 %396
    %v398 = vsel %vm141, %v395, 0
    %v400 = vsel %vm141, %v397, 0
    %402 = vmatprep.subr.mxu0 0.0
    %403 = vmatpush1.xpose.msra.mxu0 %v400
    %404 = vmatprep.subr.mxu0 0.0
    %405 = vmatpush1.xpose.msra.mxu0 0.0
    %406 = vmatprep.subr.mxu0 0.0
    %407 = vmatpush1.xpose.msra.mxu0 0.0
    %408 = vmatprep.subr.mxu0 0.0
    %409 = vmatpush1.xpose.msra.mxu0 0.0
    %410 = vmatprep.subr.mxu0 0.0
    %411 = vmatpush1.xpose.msra.mxu0 0.0
    %412 = vmatprep.subr.mxu0 0.0
    %413 = vmatpush1.xpose.msra.mxu0 0.0
    %414 = vmatprep.subr.mxu0 0.0
    %415 = vmatpush1.xpose.msra.mxu0 0.0
    %416 = vmatprep.subr.mxu0 0.0
    %417 = vmatpush1.xpose.msra.mxu0 0.0
    %418 = vmatprep.subr.mxu0 0.0
    %419 = vmatpush1.xpose.msra.mxu0 0.0
    %420 = vmatprep.subr.mxu0 0.0
    %421 = vmatpush1.xpose.msra.mxu0 0.0
    %422 = vmatprep.subr.mxu0 0.0
    %423 = vmatpush1.xpose.msra.mxu0 0.0
    %424 = vmatprep.subr.mxu0 0.0
    %425 = vmatpush1.xpose.msra.mxu0 0.0
    %426 = vmatprep.subr.mxu0 0.0
    %427 = vmatpush1.xpose.msra.mxu0 0.0
    %428 = vmatprep.subr.mxu0 0.0
    %429 = vmatpush1.xpose.msra.mxu0 0.0
    %430 = vmatprep.subr.mxu0 0.0
    %431 = vmatpush1.xpose.msra.mxu0 0.0
    %432 = vmatprep.subr.mxu0 0.0
    %433 = vmatpush1.xpose.msra.mxu0 0.0
    %434 = vmatprep.subr.mxu0 0.0
    %435 = vmatpush1.xpose.msra.mxu0 0.0
    %436 = vmatprep.subr.mxu0 0.0
    %437 = vmatpush1.xpose.msra.mxu0 0.0
    %438 = vmatprep.subr.mxu0 0.0
    %439 = vmatpush1.xpose.msra.mxu0 0.0
    %440 = vmatprep.subr.mxu0 0.0
    %441 = vmatpush1.xpose.msra.mxu0 0.0
    %442 = vmatprep.subr.mxu0 0.0
    %443 = vmatpush1.xpose.msra.mxu0 0.0
    %444 = vmatprep.subr.mxu0 0.0
    %445 = vmatpush1.xpose.msra.mxu0 0.0
    %446 = vmatprep.subr.mxu0 0.0
    %447 = vmatpush1.xpose.msra.mxu0 0.0
    %448 = vmatprep.subr.mxu0 0.0
    %449 = vmatpush1.xpose.msra.mxu0 0.0
    %450 = vmatprep.subr.mxu0 0.0
    %451 = vmatpush1.xpose.msra.mxu0 0.0
    %452 = vmatprep.subr.mxu0 0.0
    %453 = vmatpush1.xpose.msra.mxu0 0.0
    %454 = vmatprep.subr.mxu0 0.0
    %455 = vmatpush1.xpose.msra.mxu0 0.0
    %456 = vmatprep.subr.mxu0 0.0
    %457 = vmatpush1.xpose.msra.mxu0 0.0
    %458 = vmatprep.subr.mxu0 0.0
    %459 = vmatpush1.xpose.msra.mxu0 0.0
    %460 = vmatprep.subr.mxu0 0.0
    %461 = vmatpush1.xpose.msra.mxu0 0.0
    %462 = vmatprep.subr.mxu0 0.0
    %463 = vmatpush1.xpose.msra.mxu0 0.0
    %464 = vmatprep.subr.mxu0 0.0
    %465 = vmatpush1.xpose.msra.mxu0 0.0
    %466 = vmatprep.mubr.f32.mxu0 0.0
    %467 = vmatmul.mubr.f32.gmra.mrb[0].mxu0 %v398
    %v468 = vpop.f32.mrb[0].mxu0
    %v469 = vadd.f32 0.0, %v468
    %v470 = vpop.f32.mrb[0].mxu0
    %471 = vdwg.mxu0
    %v472 = vsel %vm293, %v391, -inf
    %473 = vmax.xlane.f32.xlu0 %v472
    %v474 = vpop.xlane.xlu0 %473
    %v475 = vsel %vm293, %v469, -inf
    %476 = vmax.xlane.f32.xlu0 %v475
    %v477 = vpop.xlane.xlu0 %476
    %v478 = vsub.f32 %v391, %v474
    %v479 = vsub.f32 %v469, %v477
    %v480 = vmul.f32 %v478, 1.442695
    %v481 = vpow.pop %v480
    %v482 = vmul.f32 %v479, 1.442695
    %v483 = vpow.pop %v482
    %v484 = vsel %vm293, %v481, 0.0
    %485 = vadd.xlane.f32.xlu0 %v484
    %v486 = vpop.xlane.xlu0 %485
    %v487 = vsel %vm293, %v483, 0.0
    %488 = vadd.xlane.f32.xlu0 %v487
    %v489 = vpop.xlane.xlu0 %488
    %v490 = vrcp.pop %v486
    %v491 = vrcp.pop %v489
    %v492 = vmul.f32 %v481, %v490
    %v493 = vmul.f32 %v483, %v491
    %495 = vrot.lane.b32.xlu0 %v129, 96
    %v496 = vpop.permute.xlu0 %495
    %v499 = vsel %vm293, %v492, 0
    %501 = vmatprep.subr.mxu0 0.0
    %502 = vmatpush1.msra.mxu0 %v496
    %503 = vmatprep.subr.mxu0 0.0
    %504 = vmatpush1.msra.mxu0 0.0
    %505 = vmatprep.subr.mxu0 0.0
    %506 = vmatpush1.msra.mxu0 0.0
    %507 = vmatprep.subr.mxu0 0.0
    %508 = vmatpush1.msra.mxu0 0.0
    %509 = vmatprep.subr.mxu0 0.0
    %510 = vmatpush1.msra.mxu0 0.0
    %511 = vmatprep.subr.mxu0 0.0
    %512 = vmatpush1.msra.mxu0 0.0
    %513 = vmatprep.subr.mxu0 0.0
    %514 = vmatpush1.msra.mxu0 0.0
    %515 = vmatprep.subr.mxu0 0.0
    %516 = vmatpush1.msra.mxu0 0.0
    %517 = vmatprep.subr.mxu0 0.0
    %518 = vmatpush1.msra.mxu0 0.0
    %519 = vmatprep.subr.mxu0 0.0
    %520 = vmatpush1.msra.mxu0 0.0
    %521 = vmatprep.subr.mxu0 0.0
    %522 = vmatpush1.msra.mxu0 0.0
    %523 = vmatprep.subr.mxu0 0.0
    %524 = vmatpush1.msra.mxu0 0.0
    %525 = vmatprep.subr.mxu0 0.0
    %526 = vmatpush1.msra.mxu0 0.0
    %527 = vmatprep.subr.mxu0 0.0
    %528 = vmatpush1.msra.mxu0 0.0
    %529 = vmatprep.subr.mxu0 0.0
    %530 = vmatpush1.msra.mxu0 0.0
    %531 = vmatprep.subr.mxu0 0.0
    %532 = vmatpush1.msra.mxu0 0.0
    %533 = vmatprep.subr.mxu0 0.0
    %534 = vmatpush1.msra.mxu0 0.0
    %535 = vmatprep.subr.mxu0 0.0
    %536 = vmatpush1.msra.mxu0 0.0
    %537 = vmatprep.subr.mxu0 0.0
    %538 = vmatpush1.msra.mxu0 0.0
    %539 = vmatprep.subr.mxu0 0.0
    %540 = vmatpush1.msra.mxu0 0.0
    %541 = vmatprep.subr.mxu0 0.0
    %542 = vmatpush1.msra.mxu0 0.0
    %543 = vmatprep.subr.mxu0 0.0
    %544 = vmatpush1.msra.mxu0 0.0
    %545 = vmatprep.subr.mxu0 0.0
    %546 = vmatpush1.msra.mxu0 0.0
    %547 = vmatprep.subr.mxu0 0.0
    %548 = vmatpush1.msra.mxu0 0.0
    %549 = vmatprep.subr.mxu0 0.0
    %550 = vmatpush1.msra.mxu0 0.0
    %551 = vmatprep.subr.mxu0 0.0
    %552 = vmatpush1.msra.mxu0 0.0
    %553 = vmatprep.subr.mxu0 0.0
    %554 = vmatpush1.msra.mxu0 0.0
    %555 = vmatprep.subr.mxu0 0.0
    %556 = vmatpush1.msra.mxu0 0.0
    %557 = vmatprep.subr.mxu0 0.0
    %558 = vmatpush1.msra.mxu0 0.0
    %559 = vmatprep.subr.mxu0 0.0
    %560 = vmatpush1.msra.mxu0 0.0
    %561 = vmatprep.subr.mxu0 0.0
    %562 = vmatpush1.msra.mxu0 0.0
    %563 = vmatprep.subr.mxu0 0.0
    %564 = vmatpush1.msra.mxu0 0.0
    %565 = vmatprep.mubr.f32.mxu0 0.0
    %566 = vmatmul.mubr.f32.gmra.mrb[0].mxu0 %v499
    %v567 = vpop.f32.mrb[0].mxu0
    %v568 = vadd.f32 0.0, %v567
    %v569 = vpop.f32.mrb[0].mxu0
    %570 = vdwg.mxu0
    %572 = vrot.lane.b32.xlu0 %v135, 96
    %v573 = vpop.permute.xlu0 %572
    %v576 = vsel %vm293, %v493, 0
    %578 = vmatprep.subr.mxu0 0.0
    %579 = vmatpush1.msra.mxu0 %v573
    %580 = vmatprep.subr.mxu0 0.0
    %581 = vmatpush1.msra.mxu0 0.0
    %582 = vmatprep.subr.mxu0 0.0
    %583 = vmatpush1.msra.mxu0 0.0
    %584 = vmatprep.subr.mxu0 0.0
    %585 = vmatpush1.msra.mxu0 0.0
    %586 = vmatprep.subr.mxu0 0.0
    %587 = vmatpush1.msra.mxu0 0.0
    %588 = vmatprep.subr.mxu0 0.0
    %589 = vmatpush1.msra.mxu0 0.0
    %590 = vmatprep.subr.mxu0 0.0
    %591 = vmatpush1.msra.mxu0 0.0
    %592 = vmatprep.subr.mxu0 0.0
    %593 = vmatpush1.msra.mxu0 0.0
    %594 = vmatprep.subr.mxu0 0.0
    %595 = vmatpush1.msra.mxu0 0.0
    %596 = vmatprep.subr.mxu0 0.0
    %597 = vmatpush1.msra.mxu0 0.0
    %598 = vmatprep.subr.mxu0 0.0
    %599 = vmatpush1.msra.mxu0 0.0
    %600 = vmatprep.subr.mxu0 0.0
    %601 = vmatpush1.msra.mxu0 0.0
    %602 = vmatprep.subr.mxu0 0.0
    %603 = vmatpush1.msra.mxu0 0.0
    %604 = vmatprep.subr.mxu0 0.0
    %605 = vmatpush1.msra.mxu0 0.0
    %606 = vmatprep.subr.mxu0 0.0
    %607 = vmatpush1.msra.mxu0 0.0
    %608 = vmatprep.subr.mxu0 0.0
    %609 = vmatpush1.msra.mxu0 0.0
    %610 = vmatprep.subr.mxu0 0.0
    %611 = vmatpush1.msra.mxu0 0.0
    %612 = vmatprep.subr.mxu0 0.0
    %613 = vmatpush1.msra.mxu0 0.0
    %614 = vmatprep.subr.mxu0 0.0
    %615 = vmatpush1.msra.mxu0 0.0
    %616 = vmatprep.subr.mxu0 0.0
    %617 = vmatpush1.msra.mxu0 0.0
    %618 = vmatprep.subr.mxu0 0.0
    %619 = vmatpush1.msra.mxu0 0.0
    %620 = vmatprep.subr.mxu0 0.0
    %621 = vmatpush1.msra.mxu0 0.0
    %622 = vmatprep.subr.mxu0 0.0
    %623 = vmatpush1.msra.mxu0 0.0
    %624 = vmatprep.subr.mxu0 0.0
    %625 = vmatpush1.msra.mxu0 0.0
    %626 = vmatprep.subr.mxu0 0.0
    %627 = vmatpush1.msra.mxu0 0.0
    %628 = vmatprep.subr.mxu0 0.0
    %629 = vmatpush1.msra.mxu0 0.0
    %630 = vmatprep.subr.mxu0 0.0
    %631 = vmatpush1.msra.mxu0 0.0
    %632 = vmatprep.subr.mxu0 0.0
    %633 = vmatpush1.msra.mxu0 0.0
    %634 = vmatprep.subr.mxu0 0.0
    %635 = vmatpush1.msra.mxu0 0.0
    %636 = vmatprep.subr.mxu0 0.0
    %637 = vmatpush1.msra.mxu0 0.0
    %638 = vmatprep.subr.mxu0 0.0
    %639 = vmatpush1.msra.mxu0 0.0
    %640 = vmatprep.subr.mxu0 0.0
    %641 = vmatpush1.msra.mxu0 0.0
    %642 = vmatprep.mubr.f32.mxu0 0.0
    %643 = vmatmul.mubr.f32.gmra.mrb[0].mxu0 %v576
    %v644 = vpop.f32.mrb[0].mxu0
    %v645 = vadd.f32 0.0, %v644
    %v646 = vpop.f32.mrb[0].mxu0
    %647 = vdwg.mxu0
    %v649 = vsel %vm293, %v314, 0
    %651 = vmatprep.subr.mxu0 0.0
    %652 = vmatpush1.msra.mxu0 %v129
    %653 = vmatprep.subr.mxu0 0.0
    %654 = vmatpush1.msra.mxu0 0.0
    %655 = vmatprep.subr.mxu0 0.0
    %656 = vmatpush1.msra.mxu0 0.0
    %657 = vmatprep.subr.mxu0 0.0
    %658 = vmatpush1.msra.mxu0 0.0
    %659 = vmatprep.subr.mxu0 0.0
    %660 = vmatpush1.msra.mxu0 0.0
    %661 = vmatprep.subr.mxu0 0.0
    %662 = vmatpush1.msra.mxu0 0.0
    %663 = vmatprep.subr.mxu0 0.0
    %664 = vmatpush1.msra.mxu0 0.0
    %665 = vmatprep.subr.mxu0 0.0
    %666 = vmatpush1.msra.mxu0 0.0
    %667 = vmatprep.subr.mxu0 0.0
    %668 = vmatpush1.msra.mxu0 0.0
    %669 = vmatprep.subr.mxu0 0.0
    %670 = vmatpush1.msra.mxu0 0.0
    %671 = vmatprep.subr.mxu0 0.0
    %672 = vmatpush1.msra.mxu0 0.0
    %673 = vmatprep.subr.mxu0 0.0
    %674 = vmatpush1.msra.mxu0 0.0
    %675 = vmatprep.subr.mxu0 0.0
    %676 = vmatpush1.msra.mxu0 0.0
    %677 = vmatprep.subr.mxu0 0.0
    %678 = vmatpush1.msra.mxu0 0.0
    %679 = vmatprep.subr.mxu0 0.0
    %680 = vmatpush1.msra.mxu0 0.0
    %681 = vmatprep.subr.mxu0 0.0
    %682 = vmatpush1.msra.mxu0 0.0
    %683 = vmatprep.subr.mxu0 0.0
    %684 = vmatpush1.msra.mxu0 0.0
    %685 = vmatprep.subr.mxu0 0.0
    %686 = vmatpush1.msra.mxu0 0.0
    %687 = vmatprep.subr.mxu0 0.0
    %688 = vmatpush1.msra.mxu0 0.0
    %689 = vmatprep.subr.mxu0 0.0
    %690 = vmatpush1.msra.mxu0 0.0
    %691 = vmatprep.subr.mxu0 0.0
    %692 = vmatpush1.msra.mxu0 0.0
    %693 = vmatprep.subr.mxu0 0.0
    %694 = vmatpush1.msra.mxu0 0.0
    %695 = vmatprep.subr.mxu0 0.0
    %696 = vmatpush1.msra.mxu0 0.0
    %697 = vmatprep.subr.mxu0 0.0
    %698 = vmatpush1.msra.mxu0 0.0
    %699 = vmatprep.subr.mxu0 0.0
    %700 = vmatpush1.msra.mxu0 0.0
    %701 = vmatprep.subr.mxu0 0.0
    %702 = vmatpush1.msra.mxu0 0.0
    %703 = vmatprep.subr.mxu0 0.0
    %704 = vmatpush1.msra.mxu0 0.0
    %705 = vmatprep.subr.mxu0 0.0
    %706 = vmatpush1.msra.mxu0 0.0
    %707 = vmatprep.subr.mxu0 0.0
    %708 = vmatpush1.msra.mxu0 0.0
    %709 = vmatprep.subr.mxu0 0.0
    %710 = vmatpush1.msra.mxu0 0.0
    %711 = vmatprep.subr.mxu0 0.0
    %712 = vmatpush1.msra.mxu0 0.0
    %713 = vmatprep.subr.mxu0 0.0
    %714 = vmatpush1.msra.mxu0 0.0
    %715 = vmatprep.mubr.f32.mxu0 0.0
    %716 = vmatmul.mubr.f32.gmra.mrb[0].mxu0 %v649
    %v717 = vpop.f32.mrb[0].mxu0
    %v718 = vadd.f32 %v568, %v717
    %v719 = vpop.f32.mrb[0].mxu0
    %720 = vdwg.mxu0
    %v722 = vsel %vm293, %v315, 0
    %724 = vmatprep.subr.mxu0 0.0
    %725 = vmatpush1.msra.mxu0 %v135
    %726 = vmatprep.subr.mxu0 0.0
    %727 = vmatpush1.msra.mxu0 0.0
    %728 = vmatprep.subr.mxu0 0.0
    %729 = vmatpush1.msra.mxu0 0.0
    %730 = vmatprep.subr.mxu0 0.0
    %731 = vmatpush1.msra.mxu0 0.0
    %732 = vmatprep.subr.mxu0 0.0
    %733 = vmatpush1.msra.mxu0 0.0
    %734 = vmatprep.subr.mxu0 0.0
    %735 = vmatpush1.msra.mxu0 0.0
    %736 = vmatprep.subr.mxu0 0.0
    %737 = vmatpush1.msra.mxu0 0.0
    %738 = vmatprep.subr.mxu0 0.0
    %739 = vmatpush1.msra.mxu0 0.0
    %740 = vmatprep.subr.mxu0 0.0
    %741 = vmatpush1.msra.mxu0 0.0
    %742 = vmatprep.subr.mxu0 0.0
    %743 = vmatpush1.msra.mxu0 0.0
    %744 = vmatprep.subr.mxu0 0.0
    %745 = vmatpush1.msra.mxu0 0.0
    %746 = vmatprep.subr.mxu0 0.0
    %747 = vmatpush1.msra.mxu0 0.0
    %748 = vmatprep.subr.mxu0 0.0
    %749 = vmatpush1.msra.mxu0 0.0
    %750 = vmatprep.subr.mxu0 0.0
    %751 = vmatpush1.msra.mxu0 0.0
    %752 = vmatprep.subr.mxu0 0.0
    %753 = vmatpush1.msra.mxu0 0.0
    %754 = vmatprep.subr.mxu0 0.0
    %755 = vmatpush1.msra.mxu0 0.0
    %756 = vmatprep.subr.mxu0 0.0
    %757 = vmatpush1.msra.mxu0 0.0
    %758 = vmatprep.subr.mxu0 0.0
    %759 = vmatpush1.msra.mxu0 0.0
    %760 = vmatprep.subr.mxu0 0.0
    %761 = vmatpush1.msra.mxu0 0.0
    %762 = vmatprep.subr.mxu0 0.0
    %763 = vmatpush1.msra.mxu0 0.0
    %764 = vmatprep.subr.mxu0 0.0
    %765 = vmatpush1.msra.mxu0 0.0
    %766 = vmatprep.subr.mxu0 0.0
    %767 = vmatpush1.msra.mxu0 0.0
    %768 = vmatprep.subr.mxu0 0.0
    %769 = vmatpush1.msra.mxu0 0.0
    %770 = vmatprep.subr.mxu0 0.0
    %771 = vmatpush1.msra.mxu0 0.0
    %772 = vmatprep.subr.mxu0 0.0
    %773 = vmatpush1.msra.mxu0 0.0
    %774 = vmatprep.subr.mxu0 0.0
    %775 = vmatpush1.msra.mxu0 0.0
    %776 = vmatprep.subr.mxu0 0.0
    %777 = vmatpush1.msra.mxu0 0.0
    %778 = vmatprep.subr.mxu0 0.0
    %779 = vmatpush1.msra.mxu0 0.0
    %780 = vmatprep.subr.mxu0 0.0
    %781 = vmatpush1.msra.mxu0 0.0
    %782 = vmatprep.subr.mxu0 0.0
    %783 = vmatpush1.msra.mxu0 0.0
    %784 = vmatprep.subr.mxu0 0.0
    %785 = vmatpush1.msra.mxu0 0.0
    %786 = vmatprep.subr.mxu0 0.0
    %787 = vmatpush1.msra.mxu0 0.0
    %788 = vmatprep.mubr.f32.mxu0 0.0
    %789 = vmatmul.mubr.f32.gmra.mrb[0].mxu0 %v722
    %v790 = vpop.f32.mrb[0].mxu0
    %v791 = vadd.f32 %v645, %v790
    %v792 = vpop.f32.mrb[0].mxu0
    %793 = vdwg.mxu0
    %794 = vrot.lane.b32.xlu0 %v127, 96
    %v795 = vpop.permute.xlu0 %794
    %796 = vrot.lane.b32.xlu0 %v127, 32
    %v797 = vpop.permute.xlu0 %796
    %v798 = vsel %vm141, %v795, 0
    %v800 = vsel %vm141, %v797, 0
    %802 = vmatprep.subr.mxu0 0.0
    %803 = vmatpush1.xpose.msra.mxu0 %v800
    %804 = vmatprep.subr.mxu0 0.0
    %805 = vmatpush1.xpose.msra.mxu0 0.0
    %806 = vmatprep.subr.mxu0 0.0
    %807 = vmatpush1.xpose.msra.mxu0 0.0
    %808 = vmatprep.subr.mxu0 0.0
    %809 = vmatpush1.xpose.msra.mxu0 0.0
    %810 = vmatprep.subr.mxu0 0.0
    %811 = vmatpush1.xpose.msra.mxu0 0.0
    %812 = vmatprep.subr.mxu0 0.0
    %813 = vmatpush1.xpose.msra.mxu0 0.0
    %814 = vmatprep.subr.mxu0 0.0
    %815 = vmatpush1.xpose.msra.mxu0 0.0
    %816 = vmatprep.subr.mxu0 0.0
    %817 = vmatpush1.xpose.msra.mxu0 0.0
    %818 = vmatprep.subr.mxu0 0.0
    %819 = vmatpush1.xpose.msra.mxu0 0.0
    %820 = vmatprep.subr.mxu0 0.0
    %821 = vmatpush1.xpose.msra.mxu0 0.0
    %822 = vmatprep.subr.mxu0 0.0
    %823 = vmatpush1.xpose.msra.mxu0 0.0
    %824 = vmatprep.subr.mxu0 0.0
    %825 = vmatpush1.xpose.msra.mxu0 0.0
    %826 = vmatprep.subr.mxu0 0.0
    %827 = vmatpush1.xpose.msra.mxu0 0.0
    %828 = vmatprep.subr.mxu0 0.0
    %829 = vmatpush1.xpose.msra.mxu0 0.0
    %830 = vmatprep.subr.mxu0 0.0
    %831 = vmatpush1.xpose.msra.mxu0 0.0
    %832 = vmatprep.subr.mxu0 0.0
    %833 = vmatpush1.xpose.msra.mxu0 0.0
    %834 = vmatprep.subr.mxu0 0.0
    %835 = vmatpush1.xpose.msra.mxu0 0.0
    %836 = vmatprep.subr.mxu0 0.0
    %837 = vmatpush1.xpose.msra.mxu0 0.0
    %838 = vmatprep.subr.mxu0 0.0
    %839 = vmatpush1.xpose.msra.mxu0 0.0
    %840 = vmatprep.subr.mxu0 0.0
    %841 = vmatpush1.xpose.msra.mxu0 0.0
    %842 = vmatprep.subr.mxu0 0.0
    %843 = vmatpush1.xpose.msra.mxu0 0.0
    %844 = vmatprep.subr.mxu0 0.0
    %845 = vmatpush1.xpose.msra.mxu0 0.0
    %846 = vmatprep.subr.mxu0 0.0
    %847 = vmatpush1.xpose.msra.mxu0 0.0
    %848 = vmatprep.subr.mxu0 0.0
    %849 = vmatpush1.xpose.msra.mxu0 0.0
    %850 = vmatprep.subr.mxu0 0.0
    %851 = vmatpush1.xpose.msra.mxu0 0.0
    %852 = vmatprep.subr.mxu0 0.0
    %853 = vmatpush1.xpose.msra.mxu0 0.0
    %854 = vmatprep.subr.mxu0 0.0
    %855 = vmatpush1.xpose.msra.mxu0 0.0
    %856 = vmatprep.subr.mxu0 0.0
    %857 = vmatpush1.xpose.msra.mxu0 0.0
    %858 = vmatprep.subr.mxu0 0.0
    %859 = vmatpush1.xpose.msra.mxu0 0.0
    %860 = vmatprep.subr.mxu0 0.0
    %861 = vmatpush1.xpose.msra.mxu0 0.0
    %862 = vmatprep.subr.mxu0 0.0
    %863 = vmatpush1.xpose.msra.mxu0 0.0
    %864 = vmatprep.subr.mxu0 0.0
    %865 = vmatpush1.xpose.msra.mxu0 0.0
    %866 = vmatprep.mubr.f32.mxu0 0.0
    %867 = vmatmul.mubr.f32.gmra.mrb[0].mxu0 %v798
    %v868 = vpop.f32.mrb[0].mxu0
    %v869 = vadd.f32 0.0, %v868
    %v870 = vpop.f32.mrb[0].mxu0
    %871 = vdwg.mxu0
    %872 = vrot.lane.b32.xlu0 %v133, 96
    %v873 = vpop.permute.xlu0 %872
    %874 = vrot.lane.b32.xlu0 %v133, 32
    %v875 = vpop.permute.xlu0 %874
    %v876 = vsel %vm141, %v873, 0
    %v878 = vsel %vm141, %v875, 0
    %880 = vmatprep.subr.mxu0 0.0
    %881 = vmatpush1.xpose.msra.mxu0 %v878
    %882 = vmatprep.subr.mxu0 0.0
    %883 = vmatpush1.xpose.msra.mxu0 0.0
    %884 = vmatprep.subr.mxu0 0.0
    %885 = vmatpush1.xpose.msra.mxu0 0.0
    %886 = vmatprep.subr.mxu0 0.0
    %887 = vmatpush1.xpose.msra.mxu0 0.0
    %888 = vmatprep.subr.mxu0 0.0
    %889 = vmatpush1.xpose.msra.mxu0 0.0
    %890 = vmatprep.subr.mxu0 0.0
    %891 = vmatpush1.xpose.msra.mxu0 0.0
    %892 = vmatprep.subr.mxu0 0.0
    %893 = vmatpush1.xpose.msra.mxu0 0.0
    %894 = vmatprep.subr.mxu0 0.0
    %895 = vmatpush1.xpose.msra.mxu0 0.0
    %896 = vmatprep.subr.mxu0 0.0
    %897 = vmatpush1.xpose.msra.mxu0 0.0
    %898 = vmatprep.subr.mxu0 0.0
    %899 = vmatpush1.xpose.msra.mxu0 0.0
    %900 = vmatprep.subr.mxu0 0.0
    %901 = vmatpush1.xpose.msra.mxu0 0.0
    %902 = vmatprep.subr.mxu0 0.0
    %903 = vmatpush1.xpose.msra.mxu0 0.0
    %904 = vmatprep.subr.mxu0 0.0
    %905 = vmatpush1.xpose.msra.mxu0 0.0
    %906 = vmatprep.subr.mxu0 0.0
    %907 = vmatpush1.xpose.msra.mxu0 0.0
    %908 = vmatprep.subr.mxu0 0.0
    %909 = vmatpush1.xpose.msra.mxu0 0.0
    %910 = vmatprep.subr.mxu0 0.0
    %911 = vmatpush1.xpose.msra.mxu0 0.0
    %912 = vmatprep.subr.mxu0 0.0
    %913 = vmatpush1.xpose.msra.mxu0 0.0
    %914 = vmatprep.subr.mxu0 0.0
    %915 = vmatpush1.xpose.msra.mxu0 0.0
    %916 = vmatprep.subr.mxu0 0.0
    %917 = vmatpush1.xpose.msra.mxu0 0.0
    %918 = vmatprep.subr.mxu0 0.0
    %919 = vmatpush1.xpose.msra.mxu0 0.0
    %920 = vmatprep.subr.mxu0 0.0
    %921 = vmatpush1.xpose.msra.mxu0 0.0
    %922 = vmatprep.subr.mxu0 0.0
    %923 = vmatpush1.xpose.msra.mxu0 0.0
    %924 = vmatprep.subr.mxu0 0.0
    %925 = vmatpush1.xpose.msra.mxu0 0.0
    %926 = vmatprep.subr.mxu0 0.0
    %927 = vmatpush1.xpose.msra.mxu0 0.0
    %928 = vmatprep.subr.mxu0 0.0
    %929 = vmatpush1.xpose.msra.mxu0 0.0
    %930 = vmatprep.subr.mxu0 0.0
    %931 = vmatpush1.xpose.msra.mxu0 0.0
    %932 = vmatprep.subr.mxu0 0.0
    %933 = vmatpush1.xpose.msra.mxu0 0.0
    %934 = vmatprep.subr.mxu0 0.0
    %935 = vmatpush1.xpose.msra.mxu0 0.0
    %936 = vmatprep.subr.mxu0 0.0
    %937 = vmatpush1.xpose.msra.mxu0 0.0
    %938 = vmatprep.subr.mxu0 0.0
    %939 = vmatpush1.xpose.msra.mxu0 0.0
    %940 = vmatprep.subr.mxu0 0.0
    %941 = vmatpush1.xpose.msra.mxu0 0.0
    %942 = vmatprep.subr.mxu0 0.0
    %943 = vmatpush1.xpose.msra.mxu0 0.0
    %944 = vmatprep.mubr.f32.mxu0 0.0
    %945 = vmatmul.mubr.f32.gmra.mrb[0].mxu0 %v876
    %v946 = vpop.f32.mrb[0].mxu0
    %v947 = vadd.f32 0.0, %v946
    %v948 = vpop.f32.mrb[0].mxu0
    %949 = vdwg.mxu0
    %v950 = vsel %vm293, %v869, -inf
    %951 = vmax.xlane.f32.xlu0 %v950
    %v952 = vpop.xlane.xlu0 %951
    %v953 = vsel %vm293, %v947, -inf
    %954 = vmax.xlane.f32.xlu0 %v953
    %v955 = vpop.xlane.xlu0 %954
    %v956 = vsub.f32 %v869, %v952
    %v957 = vsub.f32 %v947, %v955
    %v958 = vmul.f32 %v956, 1.442695
    %v959 = vpow.pop %v958
    %v960 = vmul.f32 %v957, 1.442695
    %v961 = vpow.pop %v960
    %v962 = vsel %vm293, %v959, 0.0
    %963 = vadd.xlane.f32.xlu0 %v962
    %v964 = vpop.xlane.xlu0 %963
    %v965 = vsel %vm293, %v961, 0.0
    %966 = vadd.xlane.f32.xlu0 %v965
    %v967 = vpop.xlane.xlu0 %966
    %v968 = vrcp.pop %v964
    %v969 = vrcp.pop %v967
    %v970 = vmul.f32 %v959, %v968
    %v971 = vmul.f32 %v961, %v969
    %972 = vrot.lane.b32.xlu0 %v129, 64
    %v973 = vpop.permute.xlu0 %972
    %v976 = vsel %vm293, %v970, 0
    %978 = vmatprep.subr.mxu0 0.0
    %979 = vmatpush1.msra.mxu0 %v973
    %980 = vmatprep.subr.mxu0 0.0
    %981 = vmatpush1.msra.mxu0 0.0
    %982 = vmatprep.subr.mxu0 0.0
    %983 = vmatpush1.msra.mxu0 0.0
    %984 = vmatprep.subr.mxu0 0.0
    %985 = vmatpush1.msra.mxu0 0.0
    %986 = vmatprep.subr.mxu0 0.0
    %987 = vmatpush1.msra.mxu0 0.0
    %988 = vmatprep.subr.mxu0 0.0
    %989 = vmatpush1.msra.mxu0 0.0
    %990 = vmatprep.subr.mxu0 0.0
    %991 = vmatpush1.msra.mxu0 0.0
    %992 = vmatprep.subr.mxu0 0.0
    %993 = vmatpush1.msra.mxu0 0.0
    %994 = vmatprep.subr.mxu0 0.0
    %995 = vmatpush1.msra.mxu0 0.0
    %996 = vmatprep.subr.mxu0 0.0
    %997 = vmatpush1.msra.mxu0 0.0
    %998 = vmatprep.subr.mxu0 0.0
    %999 = vmatpush1.msra.mxu0 0.0
    %1000 = vmatprep.subr.mxu0 0.0
    %1001 = vmatpush1.msra.mxu0 0.0
    %1002 = vmatprep.subr.mxu0 0.0
    %1003 = vmatpush1.msra.mxu0 0.0
    %1004 = vmatprep.subr.mxu0 0.0
    %1005 = vmatpush1.msra.mxu0 0.0
    %1006 = vmatprep.subr.mxu0 0.0
    %1007 = vmatpush1.msra.mxu0 0.0
    %1008 = vmatprep.subr.mxu0 0.0
    %1009 = vmatpush1.msra.mxu0 0.0
    %1010 = vmatprep.subr.mxu0 0.0
    %1011 = vmatpush1.msra.mxu0 0.0
    %1012 = vmatprep.subr.mxu0 0.0
    %1013 = vmatpush1.msra.mxu0 0.0
    %1014 = vmatprep.subr.mxu0 0.0
    %1015 = vmatpush1.msra.mxu0 0.0
    %1016 = vmatprep.subr.mxu0 0.0
    %1017 = vmatpush1.msra.mxu0 0.0
    %1018 = vmatprep.subr.mxu0 0.0
    %1019 = vmatpush1.msra.mxu0 0.0
    %1020 = vmatprep.subr.mxu0 0.0
    %1021 = vmatpush1.msra.mxu0 0.0
    %1022 = vmatprep.subr.mxu0 0.0
    %1023 = vmatpush1.msra.mxu0 0.0
    %1024 = vmatprep.subr.mxu0 0.0
    %1025 = vmatpush1.msra.mxu0 0.0
    %1026 = vmatprep.subr.mxu0 0.0
    %1027 = vmatpush1.msra.mxu0 0.0
    %1028 = vmatprep.subr.mxu0 0.0
    %1029 = vmatpush1.msra.mxu0 0.0
    %1030 = vmatprep.subr.mxu0 0.0
    %1031 = vmatpush1.msra.mxu0 0.0
    %1032 = vmatprep.subr.mxu0 0.0
    %1033 = vmatpush1.msra.mxu0 0.0
    %1034 = vmatprep.subr.mxu0 0.0
    %1035 = vmatpush1.msra.mxu0 0.0
    %1036 = vmatprep.subr.mxu0 0.0
    %1037 = vmatpush1.msra.mxu0 0.0
    %1038 = vmatprep.subr.mxu0 0.0
    %1039 = vmatpush1.msra.mxu0 0.0
    %1040 = vmatprep.subr.mxu0 0.0
    %1041 = vmatpush1.msra.mxu0 0.0
    %1042 = vmatprep.mubr.f32.mxu0 0.0
    %1043 = vmatmul.mubr.f32.gmra.mrb[0].mxu0 %v976
    %v1044 = vpop.f32.mrb[0].mxu0
    %v1045 = vadd.f32 0.0, %v1044
    %v1046 = vpop.f32.mrb[0].mxu0
    %1047 = vdwg.mxu0
    %1048 = vrot.lane.b32.xlu0 %v135, 64
    %v1049 = vpop.permute.xlu0 %1048
    %v1052 = vsel %vm293, %v971, 0
    %1054 = vmatprep.subr.mxu0 0.0
    %1055 = vmatpush1.msra.mxu0 %v1049
    %1056 = vmatprep.subr.mxu0 0.0
    %1057 = vmatpush1.msra.mxu0 0.0
    %1058 = vmatprep.subr.mxu0 0.0
    %1059 = vmatpush1.msra.mxu0 0.0
    %1060 = vmatprep.subr.mxu0 0.0
    %1061 = vmatpush1.msra.mxu0 0.0
    %1062 = vmatprep.subr.mxu0 0.0
    %1063 = vmatpush1.msra.mxu0 0.0
    %1064 = vmatprep.subr.mxu0 0.0
    %1065 = vmatpush1.msra.mxu0 0.0
    %1066 = vmatprep.subr.mxu0 0.0
    %1067 = vmatpush1.msra.mxu0 0.0
    %1068 = vmatprep.subr.mxu0 0.0
    %1069 = vmatpush1.msra.mxu0 0.0
    %1070 = vmatprep.subr.mxu0 0.0
    %1071 = vmatpush1.msra.mxu0 0.0
    %1072 = vmatprep.subr.mxu0 0.0
    %1073 = vmatpush1.msra.mxu0 0.0
    %1074 = vmatprep.subr.mxu0 0.0
    %1075 = vmatpush1.msra.mxu0 0.0
    %1076 = vmatprep.subr.mxu0 0.0
    %1077 = vmatpush1.msra.mxu0 0.0
    %1078 = vmatprep.subr.mxu0 0.0
    %1079 = vmatpush1.msra.mxu0 0.0
    %1080 = vmatprep.subr.mxu0 0.0
    %1081 = vmatpush1.msra.mxu0 0.0
    %1082 = vmatprep.subr.mxu0 0.0
    %1083 = vmatpush1.msra.mxu0 0.0
    %1084 = vmatprep.subr.mxu0 0.0
    %1085 = vmatpush1.msra.mxu0 0.0
    %1086 = vmatprep.subr.mxu0 0.0
    %1087 = vmatpush1.msra.mxu0 0.0
    %1088 = vmatprep.subr.mxu0 0.0
    %1089 = vmatpush1.msra.mxu0 0.0
    %1090 = vmatprep.subr.mxu0 0.0
    %1091 = vmatpush1.msra.mxu0 0.0
    %1092 = vmatprep.subr.mxu0 0.0
    %1093 = vmatpush1.msra.mxu0 0.0
    %1094 = vmatprep.subr.mxu0 0.0
    %1095 = vmatpush1.msra.mxu0 0.0
    %1096 = vmatprep.subr.mxu0 0.0
    %1097 = vmatpush1.msra.mxu0 0.0
    %1098 = vmatprep.subr.mxu0 0.0
    %1099 = vmatpush1.msra.mxu0 0.0
    %1100 = vmatprep.subr.mxu0 0.0
    %1101 = vmatpush1.msra.mxu0 0.0
    %1102 = vmatprep.subr.mxu0 0.0
    %1103 = vmatpush1.msra.mxu0 0.0
    %1104 = vmatprep.subr.mxu0 0.0
    %1105 = vmatpush1.msra.mxu0 0.0
    %1106 = vmatprep.subr.mxu0 0.0
    %1107 = vmatpush1.msra.mxu0 0.0
    %1108 = vmatprep.subr.mxu0 0.0
    %1109 = vmatpush1.msra.mxu0 0.0
    %1110 = vmatprep.subr.mxu0 0.0
    %1111 = vmatpush1.msra.mxu0 0.0
    %1112 = vmatprep.subr.mxu0 0.0
    %1113 = vmatpush1.msra.mxu0 0.0
    %1114 = vmatprep.subr.mxu0 0.0
    %1115 = vmatpush1.msra.mxu0 0.0
    %1116 = vmatprep.subr.mxu0 0.0
    %1117 = vmatpush1.msra.mxu0 0.0
    %1118 = vmatprep.mubr.f32.mxu0 0.0
    %1119 = vmatmul.mubr.f32.gmra.mrb[0].mxu0 %v1052
    %v1120 = vpop.f32.mrb[0].mxu0
    %v1121 = vadd.f32 0.0, %v1120
    %v1122 = vpop.f32.mrb[0].mxu0
    %1123 = vdwg.mxu0
    %v1124 = vadd.f32 %v718, %v1045
    %v1125 = vadd.f32 %v791, %v1121
    %1126 = vrot.lane.b32.xlu0 %v127, 80
    %v1127 = vpop.permute.xlu0 %1126
    %1128 = vrot.lane.b32.xlu0 %v127, 16
    %v1129 = vpop.permute.xlu0 %1128
    %v1130 = vsel %vm141, %v1127, 0
    %v1132 = vsel %vm141, %v1129, 0
    %1134 = vmatprep.subr.mxu0 0.0
    %1135 = vmatpush1.xpose.msra.mxu0 %v1132
    %1136 = vmatprep.subr.mxu0 0.0
    %1137 = vmatpush1.xpose.msra.mxu0 0.0
    %1138 = vmatprep.subr.mxu0 0.0
    %1139 = vmatpush1.xpose.msra.mxu0 0.0
    %1140 = vmatprep.subr.mxu0 0.0
    %1141 = vmatpush1.xpose.msra.mxu0 0.0
    %1142 = vmatprep.subr.mxu0 0.0
    %1143 = vmatpush1.xpose.msra.mxu0 0.0
    %1144 = vmatprep.subr.mxu0 0.0
    %1145 = vmatpush1.xpose.msra.mxu0 0.0
    %1146 = vmatprep.subr.mxu0 0.0
    %1147 = vmatpush1.xpose.msra.mxu0 0.0
    %1148 = vmatprep.subr.mxu0 0.0
    %1149 = vmatpush1.xpose.msra.mxu0 0.0
    %1150 = vmatprep.subr.mxu0 0.0
    %1151 = vmatpush1.xpose.msra.mxu0 0.0
    %1152 = vmatprep.subr.mxu0 0.0
    %1153 = vmatpush1.xpose.msra.mxu0 0.0
    %1154 = vmatprep.subr.mxu0 0.0
    %1155 = vmatpush1.xpose.msra.mxu0 0.0
    %1156 = vmatprep.subr.mxu0 0.0
    %1157 = vmatpush1.xpose.msra.mxu0 0.0
    %1158 = vmatprep.subr.mxu0 0.0
    %1159 = vmatpush1.xpose.msra.mxu0 0.0
    %1160 = vmatprep.subr.mxu0 0.0
    %1161 = vmatpush1.xpose.msra.mxu0 0.0
    %1162 = vmatprep.subr.mxu0 0.0
    %1163 = vmatpush1.xpose.msra.mxu0 0.0
    %1164 = vmatprep.subr.mxu0 0.0
    %1165 = vmatpush1.xpose.msra.mxu0 0.0
    %1166 = vmatprep.subr.mxu0 0.0
    %1167 = vmatpush1.xpose.msra.mxu0 0.0
    %1168 = vmatprep.subr.mxu0 0.0
    %1169 = vmatpush1.xpose.msra.mxu0 0.0
    %1170 = vmatprep.subr.mxu0 0.0
    %1171 = vmatpush1.xpose.msra.mxu0 0.0
    %1172 = vmatprep.subr.mxu0 0.0
    %1173 = vmatpush1.xpose.msra.mxu0 0.0
    %1174 = vmatprep.subr.mxu0 0.0
    %1175 = vmatpush1.xpose.msra.mxu0 0.0
    %1176 = vmatprep.subr.mxu0 0.0
    %1177 = vmatpush1.xpose.msra.mxu0 0.0
    %1178 = vmatprep.subr.mxu0 0.0
    %1179 = vmatpush1.xpose.msra.mxu0 0.0
    %1180 = vmatprep.subr.mxu0 0.0
    %1181 = vmatpush1.xpose.msra.mxu0 0.0
    %1182 = vmatprep.subr.mxu0 0.0
    %1183 = vmatpush1.xpose.msra.mxu0 0.0
    %1184 = vmatprep.subr.mxu0 0.0
    %1185 = vmatpush1.xpose.msra.mxu0 0.0
    %1186 = vmatprep.subr.mxu0 0.0
    %1187 = vmatpush1.xpose.msra.mxu0 0.0
    %1188 = vmatprep.subr.mxu0 0.0
    %1189 = vmatpush1.xpose.msra.mxu0 0.0
    %1190 = vmatprep.subr.mxu0 0.0
    %1191 = vmatpush1.xpose.msra.mxu0 0.0
    %1192 = vmatprep.subr.mxu0 0.0
    %1193 = vmatpush1.xpose.msra.mxu0 0.0
    %1194 = vmatprep.subr.mxu0 0.0
    %1195 = vmatpush1.xpose.msra.mxu0 0.0
    %1196 = vmatprep.subr.mxu0 0.0
    %1197 = vmatpush1.xpose.msra.mxu0 0.0
    %1198 = vmatprep.mubr.f32.mxu0 0.0
    %1199 = vmatmul.mubr.f32.gmra.mrb[0].mxu0 %v1130
    %v1200 = vpop.f32.mrb[0].mxu0
    %v1201 = vadd.f32 0.0, %v1200
    %v1202 = vpop.f32.mrb[0].mxu0
    %1203 = vdwg.mxu0
    %1204 = vrot.lane.b32.xlu0 %v133, 80
    %v1205 = vpop.permute.xlu0 %1204
    %1206 = vrot.lane.b32.xlu0 %v133, 16
    %v1207 = vpop.permute.xlu0 %1206
    %v1208 = vsel %vm141, %v1205, 0
    %v1210 = vsel %vm141, %v1207, 0
    %1212 = vmatprep.subr.mxu0 0.0
    %1213 = vmatpush1.xpose.msra.mxu0 %v1210
    %1214 = vmatprep.subr.mxu0 0.0
    %1215 = vmatpush1.xpose.msra.mxu0 0.0
    %1216 = vmatprep.subr.mxu0 0.0
    %1217 = vmatpush1.xpose.msra.mxu0 0.0
    %1218 = vmatprep.subr.mxu0 0.0
    %1219 = vmatpush1.xpose.msra.mxu0 0.0
    %1220 = vmatprep.subr.mxu0 0.0
    %1221 = vmatpush1.xpose.msra.mxu0 0.0
    %1222 = vmatprep.subr.mxu0 0.0
    %1223 = vmatpush1.xpose.msra.mxu0 0.0
    %1224 = vmatprep.subr.mxu0 0.0
    %1225 = vmatpush1.xpose.msra.mxu0 0.0
    %1226 = vmatprep.subr.mxu0 0.0
    %1227 = vmatpush1.xpose.msra.mxu0 0.0
    %1228 = vmatprep.subr.mxu0 0.0
    %1229 = vmatpush1.xpose.msra.mxu0 0.0
    %1230 = vmatprep.subr.mxu0 0.0
    %1231 = vmatpush1.xpose.msra.mxu0 0.0
    %1232 = vmatprep.subr.mxu0 0.0
    %1233 = vmatpush1.xpose.msra.mxu0 0.0
    %1234 = vmatprep.subr.mxu0 0.0
    %1235 = vmatpush1.xpose.msra.mxu0 0.0
    %1236 = vmatprep.subr.mxu0 0.0
    %1237 = vmatpush1.xpose.msra.mxu0 0.0
    %1238 = vmatprep.subr.mxu0 0.0
    %1239 = vmatpush1.xpose.msra.mxu0 0.0
    %1240 = vmatprep.subr.mxu0 0.0
    %1241 = vmatpush1.xpose.msra.mxu0 0.0
    %1242 = vmatprep.subr.mxu0 0.0
    %1243 = vmatpush1.xpose.msra.mxu0 0.0
    %1244 = vmatprep.subr.mxu0 0.0
    %1245 = vmatpush1.xpose.msra.mxu0 0.0
    %1246 = vmatprep.subr.mxu0 0.0
    %1247 = vmatpush1.xpose.msra.mxu0 0.0
    %1248 = vmatprep.subr.mxu0 0.0
    %1249 = vmatpush1.xpose.msra.mxu0 0.0
    %1250 = vmatprep.subr.mxu0 0.0
    %1251 = vmatpush1.xpose.msra.mxu0 0.0
    %1252 = vmatprep.subr.mxu0 0.0
    %1253 = vmatpush1.xpose.msra.mxu0 0.0
    %1254 = vmatprep.subr.mxu0 0.0
    %1255 = vmatpush1.xpose.msra.mxu0 0.0
    %1256 = vmatprep.subr.mxu0 0.0
    %1257 = vmatpush1.xpose.msra.mxu0 0.0
    %1258 = vmatprep.subr.mxu0 0.0
    %1259 = vmatpush1.xpose.msra.mxu0 0.0
    %1260 = vmatprep.subr.mxu0 0.0
    %1261 = vmatpush1.xpose.msra.mxu0 0.0
    %1262 = vmatprep.subr.mxu0 0.0
    %1263 = vmatpush1.xpose.msra.mxu0 0.0
    %1264 = vmatprep.subr.mxu0 0.0
    %1265 = vmatpush1.xpose.msra.mxu0 0.0
    %1266 = vmatprep.subr.mxu0 0.0
    %1267 = vmatpush1.xpose.msra.mxu0 0.0
    %1268 = vmatprep.subr.mxu0 0.0
    %1269 = vmatpush1.xpose.msra.mxu0 0.0
    %1270 = vmatprep.subr.mxu0 0.0
    %1271 = vmatpush1.xpose.msra.mxu0 0.0
    %1272 = vmatprep.subr.mxu0 0.0
    %1273 = vmatpush1.xpose.msra.mxu0 0.0
    %1274 = vmatprep.subr.mxu0 0.0
    %1275 = vmatpush1.xpose.msra.mxu0 0.0
    %1276 = vmatprep.mubr.f32.mxu0 0.0
    %1277 = vmatmul.mubr.f32.gmra.mrb[0].mxu0 %v1208
    %v1278 = vpop.f32.mrb[0].mxu0
    %v1279 = vadd.f32 0.0, %v1278
    %v1280 = vpop.f32.mrb[0].mxu0
    %1281 = vdwg.mxu0
    %v1282 = vsel %vm293, %v1201, -inf
    %1283 = vmax.xlane.f32.xlu0 %v1282
    %v1284 = vpop.xlane.xlu0 %1283
    %v1285 = vsel %vm293, %v1279, -inf
    %1286 = vmax.xlane.f32.xlu0 %v1285
    %v1287 = vpop.xlane.xlu0 %1286
    %v1288 = vsub.f32 %v1201, %v1284
    %v1289 = vsub.f32 %v1279, %v1287
    %v1290 = vmul.f32 %v1288, 1.442695
    %v1291 = vpow.pop %v1290
    %v1292 = vmul.f32 %v1289, 1.442695
    %v1293 = vpow.pop %v1292
    %v1294 = vsel %vm293, %v1291, 0.0
    %1295 = vadd.xlane.f32.xlu0 %v1294
    %v1296 = vpop.xlane.xlu0 %1295
    %v1297 = vsel %vm293, %v1293, 0.0
    %1298 = vadd.xlane.f32.xlu0 %v1297
    %v1299 = vpop.xlane.xlu0 %1298
    %v1300 = vrcp.pop %v1296
    %v1301 = vrcp.pop %v1299
    %v1302 = vmul.f32 %v1291, %v1300
    %v1303 = vmul.f32 %v1293, %v1301
    %1304 = vrot.lane.b32.xlu0 %v129, 32
    %v1305 = vpop.permute.xlu0 %1304
    %v1308 = vsel %vm293, %v1302, 0
    %1310 = vmatprep.subr.mxu0 0.0
    %1311 = vmatpush1.msra.mxu0 %v1305
    %1312 = vmatprep.subr.mxu0 0.0
    %1313 = vmatpush1.msra.mxu0 0.0
    %1314 = vmatprep.subr.mxu0 0.0
    %1315 = vmatpush1.msra.mxu0 0.0
    %1316 = vmatprep.subr.mxu0 0.0
    %1317 = vmatpush1.msra.mxu0 0.0
    %1318 = vmatprep.subr.mxu0 0.0
    %1319 = vmatpush1.msra.mxu0 0.0
    %1320 = vmatprep.subr.mxu0 0.0
    %1321 = vmatpush1.msra.mxu0 0.0
    %1322 = vmatprep.subr.mxu0 0.0
    %1323 = vmatpush1.msra.mxu0 0.0
    %1324 = vmatprep.subr.mxu0 0.0
    %1325 = vmatpush1.msra.mxu0 0.0
    %1326 = vmatprep.subr.mxu0 0.0
    %1327 = vmatpush1.msra.mxu0 0.0
    %1328 = vmatprep.subr.mxu0 0.0
    %1329 = vmatpush1.msra.mxu0 0.0
    %1330 = vmatprep.subr.mxu0 0.0
    %1331 = vmatpush1.msra.mxu0 0.0
    %1332 = vmatprep.subr.mxu0 0.0
    %1333 = vmatpush1.msra.mxu0 0.0
    %1334 = vmatprep.subr.mxu0 0.0
    %1335 = vmatpush1.msra.mxu0 0.0
    %1336 = vmatprep.subr.mxu0 0.0
    %1337 = vmatpush1.msra.mxu0 0.0
    %1338 = vmatprep.subr.mxu0 0.0
    %1339 = vmatpush1.msra.mxu0 0.0
    %1340 = vmatprep.subr.mxu0 0.0
    %1341 = vmatpush1.msra.mxu0 0.0
    %1342 = vmatprep.subr.mxu0 0.0
    %1343 = vmatpush1.msra.mxu0 0.0
    %1344 = vmatprep.subr.mxu0 0.0
    %1345 = vmatpush1.msra.mxu0 0.0
    %1346 = vmatprep.subr.mxu0 0.0
    %1347 = vmatpush1.msra.mxu0 0.0
    %1348 = vmatprep.subr.mxu0 0.0
    %1349 = vmatpush1.msra.mxu0 0.0
    %1350 = vmatprep.subr.mxu0 0.0
    %1351 = vmatpush1.msra.mxu0 0.0
    %1352 = vmatprep.subr.mxu0 0.0
    %1353 = vmatpush1.msra.mxu0 0.0
    %1354 = vmatprep.subr.mxu0 0.0
    %1355 = vmatpush1.msra.mxu0 0.0
    %1356 = vmatprep.subr.mxu0 0.0
    %1357 = vmatpush1.msra.mxu0 0.0
    %1358 = vmatprep.subr.mxu0 0.0
    %1359 = vmatpush1.msra.mxu0 0.0
    %1360 = vmatprep.subr.mxu0 0.0
    %1361 = vmatpush1.msra.mxu0 0.0
    %1362 = vmatprep.subr.mxu0 0.0
    %1363 = vmatpush1.msra.mxu0 0.0
    %1364 = vmatprep.subr.mxu0 0.0
    %1365 = vmatpush1.msra.mxu0 0.0
    %1366 = vmatprep.subr.mxu0 0.0
    %1367 = vmatpush1.msra.mxu0 0.0
    %1368 = vmatprep.subr.mxu0 0.0
    %1369 = vmatpush1.msra.mxu0 0.0
    %1370 = vmatprep.subr.mxu0 0.0
    %1371 = vmatpush1.msra.mxu0 0.0
    %1372 = vmatprep.subr.mxu0 0.0
    %1373 = vmatpush1.msra.mxu0 0.0
    %1374 = vmatprep.mubr.f32.mxu0 0.0
    %1375 = vmatmul.mubr.f32.gmra.mrb[0].mxu0 %v1308
    %v1376 = vpop.f32.mrb[0].mxu0
    %v1377 = vadd.f32 0.0, %v1376
    %v1378 = vpop.f32.mrb[0].mxu0
    %1379 = vdwg.mxu0
    %1380 = vrot.lane.b32.xlu0 %v135, 32
    %v1381 = vpop.permute.xlu0 %1380
    %v1384 = vsel %vm293, %v1303, 0
    %1386 = vmatprep.subr.mxu0 0.0
    %1387 = vmatpush1.msra.mxu0 %v1381
    %1388 = vmatprep.subr.mxu0 0.0
    %1389 = vmatpush1.msra.mxu0 0.0
    %1390 = vmatprep.subr.mxu0 0.0
    %1391 = vmatpush1.msra.mxu0 0.0
    %1392 = vmatprep.subr.mxu0 0.0
    %1393 = vmatpush1.msra.mxu0 0.0
    %1394 = vmatprep.subr.mxu0 0.0
    %1395 = vmatpush1.msra.mxu0 0.0
    %1396 = vmatprep.subr.mxu0 0.0
    %1397 = vmatpush1.msra.mxu0 0.0
    %1398 = vmatprep.subr.mxu0 0.0
    %1399 = vmatpush1.msra.mxu0 0.0
    %1400 = vmatprep.subr.mxu0 0.0
    %1401 = vmatpush1.msra.mxu0 0.0
    %1402 = vmatprep.subr.mxu0 0.0
    %1403 = vmatpush1.msra.mxu0 0.0
    %1404 = vmatprep.subr.mxu0 0.0
    %1405 = vmatpush1.msra.mxu0 0.0
    %1406 = vmatprep.subr.mxu0 0.0
    %1407 = vmatpush1.msra.mxu0 0.0
    %1408 = vmatprep.subr.mxu0 0.0
    %1409 = vmatpush1.msra.mxu0 0.0
    %1410 = vmatprep.subr.mxu0 0.0
    %1411 = vmatpush1.msra.mxu0 0.0
    %1412 = vmatprep.subr.mxu0 0.0
    %1413 = vmatpush1.msra.mxu0 0.0
    %1414 = vmatprep.subr.mxu0 0.0
    %1415 = vmatpush1.msra.mxu0 0.0
    %1416 = vmatprep.subr.mxu0 0.0
    %1417 = vmatpush1.msra.mxu0 0.0
    %1418 = vmatprep.subr.mxu0 0.0
    %1419 = vmatpush1.msra.mxu0 0.0
    %1420 = vmatprep.subr.mxu0 0.0
    %1421 = vmatpush1.msra.mxu0 0.0
    %1422 = vmatprep.subr.mxu0 0.0
    %1423 = vmatpush1.msra.mxu0 0.0
    %1424 = vmatprep.subr.mxu0 0.0
    %1425 = vmatpush1.msra.mxu0 0.0
    %1426 = vmatprep.subr.mxu0 0.0
    %1427 = vmatpush1.msra.mxu0 0.0
    %1428 = vmatprep.subr.mxu0 0.0
    %1429 = vmatpush1.msra.mxu0 0.0
    %1430 = vmatprep.subr.mxu0 0.0
    %1431 = vmatpush1.msra.mxu0 0.0
    %1432 = vmatprep.subr.mxu0 0.0
    %1433 = vmatpush1.msra.mxu0 0.0
    %1434 = vmatprep.subr.mxu0 0.0
    %1435 = vmatpush1.msra.mxu0 0.0
    %1436 = vmatprep.subr.mxu0 0.0
    %1437 = vmatpush1.msra.mxu0 0.0
    %1438 = vmatprep.subr.mxu0 0.0
    %1439 = vmatpush1.msra.mxu0 0.0
    %1440 = vmatprep.subr.mxu0 0.0
    %1441 = vmatpush1.msra.mxu0 0.0
    %1442 = vmatprep.subr.mxu0 0.0
    %1443 = vmatpush1.msra.mxu0 0.0
    %1444 = vmatprep.subr.mxu0 0.0
    %1445 = vmatpush1.msra.mxu0 0.0
    %1446 = vmatprep.subr.mxu0 0.0
    %1447 = vmatpush1.msra.mxu0 0.0
    %1448 = vmatprep.subr.mxu0 0.0
    %1449 = vmatpush1.msra.mxu0 0.0
    %1450 = vmatprep.mubr.f32.mxu0 0.0
    %1451 = vmatmul.mubr.f32.gmra.mrb[0].mxu0 %v1384
    %v1452 = vpop.f32.mrb[0].mxu0
    %v1453 = vadd.f32 0.0, %v1452
    %v1454 = vpop.f32.mrb[0].mxu0
    %1455 = vdwg.mxu0
    %v1456 = vadd.f32 %v1124, %v1377
    %v1457 = vadd.f32 %v1125, %v1453
    %v1459 = vlaneseq
    %v1460 = vshrl.u32 %v1459, 7
    %v1461 = vsub.s32 0, %v1460
    %v1462 = vrot.slane %v137, %v1461
    %v1464 = vadd.f32 %v1456, %v1462
    %v1465 = vadd.f32 %v1457, %v1462
    %v1466 = vcombine.high %v1464, 0.0
    %v1468 = vunpack.c.l.s4 1983009808
    %v1469 = vunpack.c.0.s8 %v1468
    %v1470 = vlaneseq
    %v1471 = vshrl.u32 %v1470, 7
    %v1472 = vsub.s32 %v1469, %v1471
    %v1473 = vrot.slane %v1464, %v1472
    %v1475 = vunpack.c.l.s4 1983009808
    %v1476 = vunpack.c.0.s8 %v1475
    %v1477 = vlaneseq
    %v1478 = vshrl.u32 %v1477, 7
    %v1479 = vsub.s32 %v1476, %v1478
    %v1480 = vrot.slane %v1466, %v1479
    %v1481 = vcombine.high %v1465, 0.0
    %v1483 = vunpack.c.l.s4 1983009808
    %v1484 = vunpack.c.0.s8 %v1483
    %v1485 = vlaneseq
    %v1486 = vshrl.u32 %v1485, 7
    %v1487 = vsub.s32 %v1484, %v1486
    %v1488 = vrot.slane %v1465, %v1487
    %v1490 = vunpack.c.l.s4 1983009808
    %v1491 = vunpack.c.0.s8 %v1490
    %v1492 = vlaneseq
    %v1493 = vshrl.u32 %v1492, 7
    %v1494 = vsub.s32 %v1491, %v1493
    %v1495 = vrot.slane %v1481, %v1494
    %v1496 = vcombine.low %v1473, %v1488
    %v1497 = vcombine.high %v1473, %v1488
    %v1499 = vunpack.c.l.s4 1934713408
    %v1500 = vunpack.c.0.s8 %v1499
    %v1501 = vlaneseq
    %v1502 = vshrl.u32 %v1501, 7
    %v1503 = vsub.s32 %v1500, %v1502
    %v1504 = vrot.slane %v1496, %v1503
    %v1506 = vunpack.c.l.s4 1934713408
    %v1507 = vunpack.c.0.s8 %v1506
    %v1508 = vlaneseq
    %v1509 = vshrl.u32 %v1508, 7
    %v1510 = vsub.s32 %v1507, %v1509
    %v1511 = vrot.slane %v1497, %v1510
    %v1512 = vcombine.low %v1480, %v1495
    %v1513 = vcombine.high %v1480, %v1495
    %v1515 = vunpack.c.l.s4 1934713408
    %v1516 = vunpack.c.0.s8 %v1515
    %v1517 = vlaneseq
    %v1518 = vshrl.u32 %v1517, 7
    %v1519 = vsub.s32 %v1516, %v1518
    %v1520 = vrot.slane %v1512, %v1519
    %v1522 = vunpack.c.l.s4 1934713408
    %v1523 = vunpack.c.0.s8 %v1522
    %v1524 = vlaneseq
    %v1525 = vshrl.u32 %v1524, 7
    %v1526 = vsub.s32 %v1523, %v1525
    %v1527 = vrot.slane %v1513, %v1526
    %v1528 = vcombine.high %v1504, 0.0
    %v1529 = vcombine.high %v1511, 0.0
    %v1530 = vcombine.high %v1520, 0.0
    %v1531 = vcombine.high %v1527, 0.0
    %1533 = vrot.lane.b32.xlu0 %v1528, 32
    %v1534 = vpop.permute.xlu0 %1533
    %1537 = vrot.lane.b32.xlu0 %v1511, 64
    %v1538 = vpop.permute.xlu0 %1537
    %1541 = vrot.lane.b32.xlu0 %v1529, 96
    %v1542 = vpop.permute.xlu0 %1541
    %1545 = vrot.lane.b32.xlu0 %v1530, 32
    %v1546 = vpop.permute.xlu0 %1545
    %1549 = vrot.lane.b32.xlu0 %v1527, 64
    %v1550 = vpop.permute.xlu0 %1549
    %1553 = vrot.lane.b32.xlu0 %v1531, 96
    %v1554 = vpop.permute.xlu0 %1553
    %v1556 = vsel %vm53, %v1504, %v1534
    %vm1557 = vcmask 523264
    %v1558 = vsel %vm1557, %v1556, %v1538
    %vm1559 = vcmask 785408
    %v1560 = vsel %vm1559, %v1558, %v1542
    %v1561 = vsel %vm53, %v1520, %v1546
    %v1562 = vsel %vm1557, %v1561, %v1550
    %v1563 = vsel %vm1559, %v1562, %v1554
    %v1566 = vcombine.low %v1560, %v1563
    %v1568 = vunpack.c.l.s4 1983009808
    %v1569 = vunpack.c.0.s8 %v1568
    %v1570 = vlaneseq
    %v1571 = vshrl.u32 %v1570, 7
    %v1572 = vsub.s32 %v1569, %v1571
    %v1573 = vrot.slane %v1566, %v1572
    %1575 = vst [vmem:[#allocation7] sm:$0xf] %v1573
    // Predicated region
    $region22: #{tpu_custom_call.1} parent=1 // pred_check
      _
    $region23: #{tpu_custom_call.1} parent=1 // pred_check_branch
      %1577 = sbr.rel (0) target = $region25
    $region24: #{tpu_custom_call.1} parent=1 // pred_region
      %s1579 = ssub.s32 64, 64
      %1580 = vsyncadd [#allocation4], %s1579
      %s1582 = sshll.u32 [#allocation7], 4
      %s1583 = int_to_ptr.vmem [resolvable:$true] %s1582
      %1585 = dma.vmem_to_hbm [thread:$0]  %s1583, 64, %s3, [#allocation4]
    $region25: #{tpu_custom_call.1} parent=1 // pred_fallthru
      _
    // Predicated region
    $region26: #{tpu_custom_call.1} parent=1 // pred_check
      _
    $region27: #{tpu_custom_call.1} parent=1 // pred_check_branch
      %1587 = sbr.rel (0) target = $region29
    $region28: #{tpu_custom_call.1} parent=1 // pred_region
      %1588 = dma.done [#allocation4], 64
    $region29: #{tpu_custom_call.1} parent=1 // pred_fallthru
      _
    %1589 = vsyncpa [#allocation3], 1
    %1590 = vsyncpa [#allocation6], 1
    %1591 = vsyncpa [#allocation4], 1

</llo_original>
